<compile_context>
chip_gen: v6e
topology: v6e:2x2x1
jax: 0.10.0
libtpu: 0.0.40
codegen_flags: <defaults>
</compile_context>

<pallas_src>
import numpy as np

import jax
import jax.numpy as jnp
from jax import lax
from jax.experimental import pallas as pl
from jax.experimental.pallas import tpu as pltpu

_BIG = 1e30


def _make_kernel(num_edges: int, channels: int, inv_temp: float):
    C = channels

    def kernel(segl_ref, segr_ref, node_l_ref, node_r_ref, wkv_ref, wo_ref, bo_ref,
               out_l_ref, out_r_ref,
               kv_l_ref, kv_r_ref,
               m_l_ref, s_l_ref, acc_l_ref,
               m_r_ref, s_r_ref, acc_r_ref):
        f32 = jnp.float32
        t = pl.program_id(0)
        n_tiles = pl.num_programs(0)
        TE = segl_ref.shape[0]
        NL = node_l_ref.shape[0]
        NR = node_r_ref.shape[0]

        # ---- first tile: fused key/value projection + accumulator init --------
        @pl.when(t == 0)
        def _init():
            wkv = wkv_ref[...]                                                 # [C, 2C]
            kv_l_ref[...] = jnp.dot(node_l_ref[...], wkv, preferred_element_type=f32)
            kv_r_ref[...] = jnp.dot(node_r_ref[...], wkv, preferred_element_type=f32)
            m_l_ref[...] = jnp.full_like(m_l_ref, -_BIG)
            m_r_ref[...] = jnp.full_like(m_r_ref, -_BIG)
            s_l_ref[...] = jnp.zeros_like(s_l_ref)
            s_r_ref[...] = jnp.zeros_like(s_r_ref)
            acc_l_ref[...] = jnp.zeros_like(acc_l_ref)
            acc_r_ref[...] = jnp.zeros_like(acc_r_ref)

        # ---- one-hot gather matrices for this edge tile ------------------------
        segl = segl_ref[...]                                                   # [TE, 1] i32
        segr = segr_ref[...]
        e_idx = t * TE + lax.broadcasted_iota(jnp.int32, (TE, 1), 0)
        valid = e_idx < num_edges                                              # padded edges

        eq_l = (lax.broadcasted_iota(jnp.int32, (TE, NL), 1) == segl) & valid  # [TE, NL]
        eq_r = (lax.broadcasted_iota(jnp.int32, (TE, NR), 1) == segr) & valid  # [TE, NR]
        G_l = eq_l.astype(f32)
        G_r = eq_r.astype(f32)

        # fused [key | value] row gather: one matmul per side
        ekv_l = jnp.dot(G_l, kv_l_ref[...], preferred_element_type=f32)        # [TE, 2C]
        ekv_r = jnp.dot(G_r, kv_r_ref[...], preferred_element_type=f32)        # [TE, 2C]

        # per-edge logits: (key_l[segL] * key_r[segR]).sum(1) / temperature
        logits = jnp.sum(ekv_l[:, :C] * ekv_r[:, :C], axis=1, keepdims=True) * inv_temp

        # ---- online segment softmax + scatter-add (one call per side) ----------
        def update(G, eq, neighbor, m_ref, s_ref, acc_ref):
            masked = jnp.where(eq, logits, -_BIG)                              # [TE, N]
            tile_max = jnp.max(masked, axis=0, keepdims=True)                  # [1, N]
            m_old = m_ref[...]
            m_new = jnp.maximum(m_old, tile_max)
            alpha = jnp.exp(m_old - m_new)                                     # rescale
            # gather per-segment max back to edges (trans_b contraction, no [N,1] relayout)
            max_e = lax.dot_general(G, m_new, (((1,), (1,)), ((), ())),
                                    preferred_element_type=f32)                # [TE, 1]
            ex = jnp.exp(logits - max_e)                                       # [TE, 1]
            # single scatter for [weighted-neighbor | sum-of-exp]; G^T never built.
            scat_in = jnp.concatenate([ex * neighbor, ex], axis=1)             # [TE, C+1]
            scat = lax.dot_general(scat_in, G, (((0,), (0,)), ((), ())),
                                   preferred_element_type=f32)                 # [C+1, N]
            acc_ref[...] = alpha * acc_ref[...] + scat[:C, :]
            s_ref[...] = alpha * s_ref[...] + scat[C:, :]
            m_ref[...] = m_new

        update(G_l, eq_l, ekv_r[:, C:], m_l_ref, s_l_ref, acc_l_ref)   # message -> left nodes
        update(G_r, eq_r, ekv_l[:, C:], m_r_ref, s_r_ref, acc_r_ref)   # message -> right nodes

        # ---- last tile: normalize, out-projection (Linear+LeakyReLU) ------------
        @pl.when(t == n_tiles - 1)
        def _finalize():
            wo = wo_ref[...]                                                   # [C, OCp]
            bo = bo_ref[...]                                                   # [1, OCp]

            def emit(acc_ref, s_ref, out_ref):
                s = s_ref[...]                                                 # [1, N]
                inv = pl.reciprocal(jnp.where(s > 0, s, 1.0), approx=True)     # empty-seg safe
                msg = acc_ref[...] * inv                                       # [C, N]
                out = lax.dot_general(msg, wo, (((0,), (0,)), ((), ())),
                                      preferred_element_type=f32) + bo         # [N, OCp]
                out_ref[...] = jnp.where(out > 0, out, 0.01 * out)             # LeakyReLU

            emit(acc_l_ref, s_l_ref, out_l_ref)
            emit(acc_r_ref, s_r_ref, out_r_ref)

    return kernel


def _round_up(x: int, m: int) -> int:
    return (x + m - 1) // m * m


def multi_head_attention(node_left, segmentation_index_left, index_left,
                         node_right, segmentation_index_right, index_right,
                         params, *, edge_tile: int = 512):
    # TODO(synk): `index_left` / `index_right` feed the external `segment_softmax`
    # helper; under standard segment-softmax semantics they are redundant -> unused.
    del index_left, index_right
    NL, C = node_left.shape
    NR, _ = node_right.shape
    E = segmentation_index_left.shape[0]
    wk_t, wv_t, wo_t, bo = params
    OC = wo_t.shape[1]
    inv_temp = 1.0 / float(np.sqrt(C))

    # fused key/value projection weight  [C, 2C]
    wkv = jnp.concatenate([wk_t, wv_t], axis=1).astype(jnp.float32)

    # lane-dense output: pad output channels to a multiple of 128, slice afterwards.
    OCp = _round_up(max(OC, 128), 128)
    wo_p = jnp.pad(wo_t.astype(jnp.float32), ((0, 0), (0, OCp - OC)))
    bo_p = jnp.pad(bo.astype(jnp.float32).reshape(1, OC), ((0, 0), (0, OCp - OC)))

    # edge tiling (512 edges/tile keeps per-tile one-hots small on v5e..v7x VMEM).
    TE = _round_up(min(edge_tile, _round_up(E, 8)), 8)
    E_pad = _round_up(E, TE)
    n_tiles = E_pad // TE

    segl = jnp.pad(segmentation_index_left.astype(jnp.int32), (0, E_pad - E)).reshape(E_pad, 1)
    segr = jnp.pad(segmentation_index_right.astype(jnp.int32), (0, E_pad - E)).reshape(E_pad, 1)

    kernel = _make_kernel(num_edges=E, channels=C, inv_temp=inv_temp)

    out_l, out_r = pl.pallas_call(
        kernel,
        out_shape=(jax.ShapeDtypeStruct((NL, OCp), jnp.float32),
                   jax.ShapeDtypeStruct((NR, OCp), jnp.float32)),
        grid=(n_tiles,),
        in_specs=[
            pl.BlockSpec((TE, 1), lambda t: (t, 0)),       # seg index (left), single copy
            pl.BlockSpec((TE, 1), lambda t: (t, 0)),       # seg index (right), single copy
            pl.BlockSpec((NL, C), lambda t: (0, 0)),       # node_left  (VMEM-resident)
            pl.BlockSpec((NR, C), lambda t: (0, 0)),       # node_right (VMEM-resident)
            pl.BlockSpec((C, 2 * C), lambda t: (0, 0)),    # [wk | wv]
            pl.BlockSpec((C, OCp), lambda t: (0, 0)),      # out-projection weight (padded)
            pl.BlockSpec((1, OCp), lambda t: (0, 0)),      # out-projection bias (padded)
        ],
        out_specs=(pl.BlockSpec((NL, OCp), lambda t: (0, 0)),
                   pl.BlockSpec((NR, OCp), lambda t: (0, 0))),
        scratch_shapes=[
            pltpu.VMEM((NL, 2 * C), jnp.float32),   # kv_left  = [key | value](node_left)
            pltpu.VMEM((NR, 2 * C), jnp.float32),   # kv_right
            pltpu.VMEM((1, NL), jnp.float32),       # running max       (left segments)
            pltpu.VMEM((1, NL), jnp.float32),       # running sum-exp   (left segments)
            pltpu.VMEM((C, NL), jnp.float32),       # running weighted-neighbor sum (left)
            pltpu.VMEM((1, NR), jnp.float32),       # right side
            pltpu.VMEM((1, NR), jnp.float32),
            pltpu.VMEM((C, NR), jnp.float32),
        ],
        compiler_params=pltpu.CompilerParams(
            dimension_semantics=("arbitrary",),     # online accumulation over edge tiles
            vmem_limit_bytes=32 * 1024 * 1024,
        ),
        # TODO(synk): on v7x the left/right message paths could be split across the
        # two TensorCores with a leading parallel grid axis; single-core here.
    )(segl, segr, node_left.astype(jnp.float32), node_right.astype(jnp.float32),
      wkv, wo_p, bo_p)

    return out_l[:, :OC], out_r[:, :OC]


def _reference(node_left, seg_left, node_right, seg_right, wk_t, wv_t, wo_t, bo, temperature):
    key_l = node_left @ wk_t
    key_r = node_right @ wk_t
    val_l = node_left @ wv_t
    val_r = node_right @ wv_t
    nlc = key_l[seg_left]
    nrc = key_r[seg_right]
    nln = val_r[seg_right]
    nrn = val_l[seg_left]
    logits = jnp.sum(nlc * nrc, axis=1) / temperature

    def calc(seg, n, neighbor):
        seg_max = jnp.full((n,), -1e30, jnp.float32).at[seg].max(logits)
        ex = jnp.exp(logits - seg_max[seg])
        seg_sum = jnp.zeros((n,), jnp.float32).at[seg].add(ex)
        w = ex / seg_sum[seg]
        msg = jnp.zeros((n, neighbor.shape[1]), jnp.float32).at[seg].add(w[:, None] * neighbor)
        out = msg @ wo_t + bo
        return jnp.where(out > 0, out, 0.01 * out)

    return calc(seg_left, node_left.shape[0], nln), calc(seg_right, node_right.shape[0], nrn)


if __name__ == "__main__":
    NL, NR, E, C, OC = 8, 8, 37, 32, 16
    key = jax.random.PRNGKey(0)
    k1, k2, k3, k4, k5, k6, k7, k8 = jax.random.split(key, 8)

    node_left = jax.random.normal(k1, (NL, C), jnp.float32)
    node_right = jax.random.normal(k2, (NR, C), jnp.float32)
    seg_left = jax.random.randint(k3, (E,), 0, NL, jnp.int32)
    seg_right = jax.random.randint(k4, (E,), 0, NR, jnp.int32)
    idx_left = jnp.arange(E, dtype=jnp.int32)     # unused (see TODO above)
    idx_right = jnp.arange(E, dtype=jnp.int32)

    # deterministic parameter init (shapes from nn.Linear; values synthetic)
    xavier_std = float(np.sqrt(2.0 / (C + C)))
    wk_t = xavier_std * jax.random.normal(k5, (C, C), jnp.float32)   # key_projection.weight.T
    wv_t = xavier_std * jax.random.normal(k6, (C, C), jnp.float32)   # value_projection.weight.T
    wo_t = (1.0 / np.sqrt(C)) * jax.random.normal(k7, (C, OC), jnp.float32)
    bo = 0.01 * jax.random.normal(k8, (OC,), jnp.float32)
    params = (wk_t, wv_t, wo_t, bo)

    ref_l, ref_r = _reference(node_left, seg_left, node_right, seg_right,
                              wk_t, wv_t, wo_t, bo, float(np.sqrt(C)))

    # single edge tile (padded last tile exercised: E=37 -> TE=40)
    out_l, out_r = multi_head_attention(node_left, seg_left, idx_left,
                                        node_right, seg_right, idx_right, params)
    jax.block_until_ready((out_l, out_r))
    assert out_l.shape == (NL, OC) and out_r.shape == (NR, OC)
    assert np.allclose(np.asarray(out_l), np.asarray(ref_l), atol=3e-3, rtol=3e-3)
    assert np.allclose(np.asarray(out_r), np.asarray(ref_r), atol=3e-3, rtol=3e-3)

    # multi-tile online-softmax path (3 edge tiles of 16, last tile partially padded)
    out_l2, out_r2 = multi_head_attention(node_left, seg_left, idx_left,
                                          node_right, seg_right, idx_right, params,
                                          edge_tile=16)
    jax.block_until_ready((out_l2, out_r2))
    assert np.allclose(np.asarray(out_l2), np.asarray(ref_l), atol=3e-3, rtol=3e-3)
    assert np.allclose(np.asarray(out_r2), np.asarray(ref_r), atol=3e-3, rtol=3e-3)

    print("KERNEL_OK")
</pallas_src>

<mosaic_0001>
module attributes {stable_mosaic.version = 11 : i64} {
  func.func @kernel(%arg0: i32, %arg1: memref<40x1xi32, #tpu.memory_space<vmem>>, %arg2: memref<40x1xi32, #tpu.memory_space<vmem>>, %arg3: memref<8x32xf32, #tpu.memory_space<vmem>>, %arg4: memref<8x32xf32, #tpu.memory_space<vmem>>, %arg5: memref<32x64xf32, #tpu.memory_space<vmem>>, %arg6: memref<32x128xf32, #tpu.memory_space<vmem>>, %arg7: memref<1x128xf32, #tpu.memory_space<vmem>>, %arg8: memref<8x128xf32, #tpu.memory_space<vmem>>, %arg9: memref<8x128xf32, #tpu.memory_space<vmem>>, %arg10: memref<8x64xf32, #tpu.memory_space<vmem>>, %arg11: memref<8x64xf32, #tpu.memory_space<vmem>>, %arg12: memref<1x8xf32, #tpu.memory_space<vmem>>, %arg13: memref<1x8xf32, #tpu.memory_space<vmem>>, %arg14: memref<32x8xf32, #tpu.memory_space<vmem>>, %arg15: memref<1x8xf32, #tpu.memory_space<vmem>>, %arg16: memref<1x8xf32, #tpu.memory_space<vmem>>, %arg17: memref<32x8xf32, #tpu.memory_space<vmem>>) attributes {dimension_semantics = [#tpu.dimension_semantics<arbitrary>], iteration_bounds = array<i64: 1>, scalar_prefetch = 0 : i64, scratch_operands = 8 : i64, tpu.core_type = #tpu.core_type<tc>, window_params = [{transform_indices = @transform_0, window_bounds = array<i64: 40, 1>}, {transform_indices = @transform_1, window_bounds = array<i64: 40, 1>}, {pipeline_mode = #tpu.pipeline_mode<synchronous>, transform_indices = @transform_2, window_bounds = array<i64: 8, 32>}, {pipeline_mode = #tpu.pipeline_mode<synchronous>, transform_indices = @transform_3, window_bounds = array<i64: 8, 32>}, {pipeline_mode = #tpu.pipeline_mode<synchronous>, transform_indices = @transform_4, window_bounds = array<i64: 32, 64>}, {pipeline_mode = #tpu.pipeline_mode<synchronous>, transform_indices = @transform_5, window_bounds = array<i64: 32, 128>}, {pipeline_mode = #tpu.pipeline_mode<synchronous>, transform_indices = @transform_6, window_bounds = array<i64: 1, 128>}, {pipeline_mode = #tpu.pipeline_mode<synchronous>, transform_indices = @transform_7, window_bounds = array<i64: 8, 128>}, {pipeline_mode = #tpu.pipeline_mode<synchronous>, transform_indices = @transform_8, window_bounds = array<i64: 8, 128>}]} {
    %c0_i32 = arith.constant 0 : i32
    %0 = arith.cmpi eq, %arg0, %c0_i32 : i32
    %1 = arith.extui %0 : i1 to i32
    %c0_i32_0 = arith.constant 0 : i32
    %2 = arith.cmpi ne, %1, %c0_i32_0 : i32
    scf.if %2 {
      %c0_45 = arith.constant 0 : index
      %c0_46 = arith.constant 0 : index
      %99 = vector.load %arg5[%c0_45, %c0_46] : memref<32x64xf32, #tpu.memory_space<vmem>>, vector<32x64xf32>
      %c0_47 = arith.constant 0 : index
      %c0_48 = arith.constant 0 : index
      %100 = vector.load %arg3[%c0_47, %c0_48] : memref<8x32xf32, #tpu.memory_space<vmem>>, vector<8x32xf32>
      %cst_49 = arith.constant dense<0.000000e+00> : vector<8x64xf32>
      %101 = tpu.matmul %100, %99, %cst_49 {dimension_numbers = #tpu.dot_dimension_numbers<[1], [0], [0], [1], [0, 0, 1, 1], [], []>} : vector<8x32xf32>, vector<32x64xf32>, vector<8x64xf32> -> vector<8x64xf32>
      %c0_50 = arith.constant 0 : index
      %c0_51 = arith.constant 0 : index
      %102 = vector.load %arg10[%c0_50, %c0_51] : memref<8x64xf32, #tpu.memory_space<vmem>>, vector<8x64xf32>
      tpu.vector_store %arg10[%c0_50, %c0_51], %101 {strides = array<i32>} : memref<8x64xf32, #tpu.memory_space<vmem>>, vector<8x64xf32>,
      %c0_52 = arith.constant 0 : index
      %c0_53 = arith.constant 0 : index
      %103 = vector.load %arg4[%c0_52, %c0_53] : memref<8x32xf32, #tpu.memory_space<vmem>>, vector<8x32xf32>
      %cst_54 = arith.constant dense<0.000000e+00> : vector<8x64xf32>
      %104 = tpu.matmul %103, %99, %cst_54 {dimension_numbers = #tpu.dot_dimension_numbers<[1], [0], [0], [1], [0, 0, 1, 1], [], []>} : vector<8x32xf32>, vector<32x64xf32>, vector<8x64xf32> -> vector<8x64xf32>
      %c0_55 = arith.constant 0 : index
      %c0_56 = arith.constant 0 : index
      %105 = vector.load %arg11[%c0_55, %c0_56] : memref<8x64xf32, #tpu.memory_space<vmem>>, vector<8x64xf32>
      tpu.vector_store %arg11[%c0_55, %c0_56], %104 {strides = array<i32>} : memref<8x64xf32, #tpu.memory_space<vmem>>, vector<8x64xf32>,
      %cst_57 = arith.constant -1.000000e+30 : f32
      %106 = vector.broadcast %cst_57 : f32 to vector<1x8xf32>
      %c0_58 = arith.constant 0 : index
      %c0_59 = arith.constant 0 : index
      %107 = vector.load %arg12[%c0_58, %c0_59] : memref<1x8xf32, #tpu.memory_space<vmem>>, vector<1x8xf32>
      tpu.vector_store %arg12[%c0_58, %c0_59], %106 {strides = array<i32>} : memref<1x8xf32, #tpu.memory_space<vmem>>, vector<1x8xf32>,
      %cst_60 = arith.constant -1.000000e+30 : f32
      %108 = vector.broadcast %cst_60 : f32 to vector<1x8xf32>
      %c0_61 = arith.constant 0 : index
      %c0_62 = arith.constant 0 : index
      %109 = vector.load %arg15[%c0_61, %c0_62] : memref<1x8xf32, #tpu.memory_space<vmem>>, vector<1x8xf32>
      tpu.vector_store %arg15[%c0_61, %c0_62], %108 {strides = array<i32>} : memref<1x8xf32, #tpu.memory_space<vmem>>, vector<1x8xf32>,
      %cst_63 = arith.constant 0.000000e+00 : f32
      %110 = vector.broadcast %cst_63 : f32 to vector<1x8xf32>
      %c0_64 = arith.constant 0 : index
      %c0_65 = arith.constant 0 : index
      %111 = vector.load %arg13[%c0_64, %c0_65] : memref<1x8xf32, #tpu.memory_space<vmem>>, vector<1x8xf32>
      tpu.vector_store %arg13[%c0_64, %c0_65], %110 {strides = array<i32>} : memref<1x8xf32, #tpu.memory_space<vmem>>, vector<1x8xf32>,
      %cst_66 = arith.constant 0.000000e+00 : f32
      %112 = vector.broadcast %cst_66 : f32 to vector<1x8xf32>
      %c0_67 = arith.constant 0 : index
      %c0_68 = arith.constant 0 : index
      %113 = vector.load %arg16[%c0_67, %c0_68] : memref<1x8xf32, #tpu.memory_space<vmem>>, vector<1x8xf32>
      tpu.vector_store %arg16[%c0_67, %c0_68], %112 {strides = array<i32>} : memref<1x8xf32, #tpu.memory_space<vmem>>, vector<1x8xf32>,
      %cst_69 = arith.constant 0.000000e+00 : f32
      %114 = vector.broadcast %cst_69 : f32 to vector<32x8xf32>
      %c0_70 = arith.constant 0 : index
      %c0_71 = arith.constant 0 : index
      %115 = vector.load %arg14[%c0_70, %c0_71] : memref<32x8xf32, #tpu.memory_space<vmem>>, vector<32x8xf32>
      tpu.vector_store %arg14[%c0_70, %c0_71], %114 {strides = array<i32>} : memref<32x8xf32, #tpu.memory_space<vmem>>, vector<32x8xf32>,
      %cst_72 = arith.constant 0.000000e+00 : f32
      %116 = vector.broadcast %cst_72 : f32 to vector<32x8xf32>
      %c0_73 = arith.constant 0 : index
      %c0_74 = arith.constant 0 : index
      %117 = vector.load %arg17[%c0_73, %c0_74] : memref<32x8xf32, #tpu.memory_space<vmem>>, vector<32x8xf32>
      tpu.vector_store %arg17[%c0_73, %c0_74], %116 {strides = array<i32>} : memref<32x8xf32, #tpu.memory_space<vmem>>, vector<32x8xf32>,
    } else {
    }
    %c0 = arith.constant 0 : index
    %c0_1 = arith.constant 0 : index
    %3 = vector.load %arg1[%c0, %c0_1] : memref<40x1xi32, #tpu.memory_space<vmem>>, vector<40x1xi32>
    %c0_2 = arith.constant 0 : index
    %c0_3 = arith.constant 0 : index
    %4 = vector.load %arg2[%c0_2, %c0_3] : memref<40x1xi32, #tpu.memory_space<vmem>>, vector<40x1xi32>
    %c40_i32 = arith.constant 40 : i32
    %5 = arith.muli %arg0, %c40_i32 : i32
    %6 = tpu.iota {dimensions = array<i32: 0>} : vector<40x1xi32>
    %7 = vector.broadcast %5 : i32 to vector<40x1xi32>
    %8 = arith.addi %7, %6 : vector<40x1xi32>
    %c37_i32 = arith.constant 37 : i32
    %9 = vector.broadcast %c37_i32 : i32 to vector<40x1xi32>
    %10 = arith.cmpi slt, %8, %9 : vector<40x1xi32>
    %11 = tpu.iota {dimensions = array<i32: 1>} : vector<40x8xi32>
    %12 = vector.broadcast %3 : vector<40x1xi32> to vector<40x8xi32>
    %13 = arith.cmpi eq, %11, %12 : vector<40x8xi32>
    %14 = vector.broadcast %10 : vector<40x1xi1> to vector<40x8xi1>
    %15 = arith.andi %13, %14 : vector<40x8xi1>
    %16 = tpu.iota {dimensions = array<i32: 1>} : vector<40x8xi32>
    %17 = vector.broadcast %4 : vector<40x1xi32> to vector<40x8xi32>
    %18 = arith.cmpi eq, %16, %17 : vector<40x8xi32>
    %19 = vector.broadcast %10 : vector<40x1xi1> to vector<40x8xi1>
    %20 = arith.andi %18, %19 : vector<40x8xi1>
    %21 = arith.extui %15 : vector<40x8xi1> to vector<40x8xi32>
    %22 = arith.sitofp %21 : vector<40x8xi32> to vector<40x8xf32>
    %23 = arith.extui %20 : vector<40x8xi1> to vector<40x8xi32>
    %24 = arith.sitofp %23 : vector<40x8xi32> to vector<40x8xf32>
    %c0_4 = arith.constant 0 : index
    %c0_5 = arith.constant 0 : index
    %25 = vector.load %arg10[%c0_4, %c0_5] : memref<8x64xf32, #tpu.memory_space<vmem>>, vector<8x64xf32>
    %cst = arith.constant dense<0.000000e+00> : vector<40x64xf32>
    %26 = tpu.matmul %22, %25, %cst {dimension_numbers = #tpu.dot_dimension_numbers<[1], [0], [0], [1], [0, 0, 1, 1], [], []>} : vector<40x8xf32>, vector<8x64xf32>, vector<40x64xf32> -> vector<40x64xf32>
    %c0_6 = arith.constant 0 : index
    %c0_7 = arith.constant 0 : index
    %27 = vector.load %arg11[%c0_6, %c0_7] : memref<8x64xf32, #tpu.memory_space<vmem>>, vector<8x64xf32>
    %cst_8 = arith.constant dense<0.000000e+00> : vector<40x64xf32>
    %28 = tpu.matmul %24, %27, %cst_8 {dimension_numbers = #tpu.dot_dimension_numbers<[1], [0], [0], [1], [0, 0, 1, 1], [], []>} : vector<40x8xf32>, vector<8x64xf32>, vector<40x64xf32> -> vector<40x64xf32>
    %29 = vector.extract_strided_slice %26 {offsets = [0, 0], sizes = [40, 32], strides = [1, 1]} : vector<40x64xf32> to vector<40x32xf32>
    %30 = vector.extract_strided_slice %28 {offsets = [0, 0], sizes = [40, 32], strides = [1, 1]} : vector<40x64xf32> to vector<40x32xf32>
    %31 = arith.mulf %29, %30 : vector<40x32xf32>
    %cst_9 = arith.constant dense<0.000000e+00> : vector<40xf32>
    %32 = vector.multi_reduction <add>, %31, %cst_9 [1] : vector<40x32xf32> to vector<40xf32>
    %33 = vector.shape_cast %32 : vector<40xf32> to vector<40x1xf32>
    %cst_10 = arith.constant 0.176776692 : f32
    %34 = vector.broadcast %cst_10 : f32 to vector<40x1xf32>
    %35 = arith.mulf %33, %34 : vector<40x1xf32>
    %36 = vector.extract_strided_slice %28 {offsets = [0, 32], sizes = [40, 32], strides = [1, 1]} : vector<40x64xf32> to vector<40x32xf32>
    %cst_11 = arith.constant -1.000000e+30 : f32
    %37 = vector.shape_cast %35 : vector<40x1xf32> to vector<40x1xf32>
    %38 = vector.broadcast %37 : vector<40x1xf32> to vector<40x8xf32>
    %39 = vector.broadcast %cst_11 : f32 to vector<40x8xf32>
    %40 = arith.select %15, %38, %39 : vector<40x8xi1>, vector<40x8xf32>
    %cst_12 = arith.constant dense<0xFF800000> : vector<8xf32>
    %41 = vector.multi_reduction <maximumf>, %40, %cst_12 [0] : vector<40x8xf32> to vector<8xf32>
    %42 = vector.shape_cast %41 : vector<8xf32> to vector<1x8xf32>
    %c0_13 = arith.constant 0 : index
    %c0_14 = arith.constant 0 : index
    %43 = vector.load %arg12[%c0_13, %c0_14] : memref<1x8xf32, #tpu.memory_space<vmem>>, vector<1x8xf32>
    %44 = arith.maximumf %43, %42 : vector<1x8xf32>
    %45 = arith.subf %43, %44 : vector<1x8xf32>
    %46 = math.exp %45 : vector<1x8xf32>
    %cst_15 = arith.constant dense<0.000000e+00> : vector<40x1xf32>
    %47 = tpu.matmul %22, %44, %cst_15 {dimension_numbers = #tpu.dot_dimension_numbers<[1], [1], [0], [0], [0, 0, 1, 0], [], []>} : vector<40x8xf32>, vector<1x8xf32>, vector<40x1xf32> -> vector<40x1xf32>
    %48 = arith.subf %35, %47 : vector<40x1xf32>
    %49 = math.exp %48 : vector<40x1xf32>
    %50 = vector.broadcast %49 : vector<40x1xf32> to vector<40x32xf32>
    %51 = arith.mulf %50, %36 : vector<40x32xf32>
    %52 = tpu.concatenate %51, %49 in 1 : vector<40x32xf32>, vector<40x1xf32> -> vector<40x33xf32>
    %cst_16 = arith.constant dense<0.000000e+00> : vector<33x8xf32>
    %53 = tpu.matmul %52, %22, %cst_16 {dimension_numbers = #tpu.dot_dimension_numbers<[0], [0], [1], [1], [0, 1, 1, 1], [], []>} : vector<40x33xf32>, vector<40x8xf32>, vector<33x8xf32> -> vector<33x8xf32>
    %c0_17 = arith.constant 0 : index
    %c0_18 = arith.constant 0 : index
    %54 = vector.load %arg14[%c0_17, %c0_18] : memref<32x8xf32, #tpu.memory_space<vmem>>, vector<32x8xf32>
    %55 = vector.broadcast %46 : vector<1x8xf32> to vector<32x8xf32>
    %56 = arith.mulf %55, %54 : vector<32x8xf32>
    %57 = vector.extract_strided_slice %53 {offsets = [0, 0], sizes = [32, 8], strides = [1, 1]} : vector<33x8xf32> to vector<32x8xf32>
    %58 = arith.addf %56, %57 : vector<32x8xf32>
    %c0_19 = arith.constant 0 : index
    %c0_20 = arith.constant 0 : index
    %59 = vector.load %arg14[%c0_19, %c0_20] : memref<32x8xf32, #tpu.memory_space<vmem>>, vector<32x8xf32>
    tpu.vector_store %arg14[%c0_19, %c0_20], %58 {strides = array<i32>} : memref<32x8xf32, #tpu.memory_space<vmem>>, vector<32x8xf32>,
    %c0_21 = arith.constant 0 : index
    %c0_22 = arith.constant 0 : index
    %60 = vector.load %arg13[%c0_21, %c0_22] : memref<1x8xf32, #tpu.memory_space<vmem>>, vector<1x8xf32>
    %61 = arith.mulf %46, %60 : vector<1x8xf32>
    %62 = vector.extract_strided_slice %53 {offsets = [32, 0], sizes = [1, 8], strides = [1, 1]} : vector<33x8xf32> to vector<1x8xf32>
    %63 = arith.addf %61, %62 : vector<1x8xf32>
    %c0_23 = arith.constant 0 : index
    %c0_24 = arith.constant 0 : index
    %64 = vector.load %arg13[%c0_23, %c0_24] : memref<1x8xf32, #tpu.memory_space<vmem>>, vector<1x8xf32>
    tpu.vector_store %arg13[%c0_23, %c0_24], %63 {strides = array<i32>} : memref<1x8xf32, #tpu.memory_space<vmem>>, vector<1x8xf32>,
    %c0_25 = arith.constant 0 : index
    %c0_26 = arith.constant 0 : index
    %65 = vector.load %arg12[%c0_25, %c0_26] : memref<1x8xf32, #tpu.memory_space<vmem>>, vector<1x8xf32>
    tpu.vector_store %arg12[%c0_25, %c0_26], %44 {strides = array<i32>} : memref<1x8xf32, #tpu.memory_space<vmem>>, vector<1x8xf32>,
    %66 = vector.extract_strided_slice %26 {offsets = [0, 32], sizes = [40, 32], strides = [1, 1]} : vector<40x64xf32> to vector<40x32xf32>
    %cst_27 = arith.constant -1.000000e+30 : f32
    %67 = vector.shape_cast %35 : vector<40x1xf32> to vector<40x1xf32>
    %68 = vector.broadcast %67 : vector<40x1xf32> to vector<40x8xf32>
    %69 = vector.broadcast %cst_27 : f32 to vector<40x8xf32>
    %70 = arith.select %20, %68, %69 : vector<40x8xi1>, vector<40x8xf32>
    %cst_28 = arith.constant dense<0xFF800000> : vector<8xf32>
    %71 = vector.multi_reduction <maximumf>, %70, %cst_28 [0] : vector<40x8xf32> to vector<8xf32>
    %72 = vector.shape_cast %71 : vector<8xf32> to vector<1x8xf32>
    %c0_29 = arith.constant 0 : index
    %c0_30 = arith.constant 0 : index
    %73 = vector.load %arg15[%c0_29, %c0_30] : memref<1x8xf32, #tpu.memory_space<vmem>>, vector<1x8xf32>
    %74 = arith.maximumf %73, %72 : vector<1x8xf32>
    %75 = arith.subf %73, %74 : vector<1x8xf32>
    %76 = math.exp %75 : vector<1x8xf32>
    %cst_31 = arith.constant dense<0.000000e+00> : vector<40x1xf32>
    %77 = tpu.matmul %24, %74, %cst_31 {dimension_numbers = #tpu.dot_dimension_numbers<[1], [1], [0], [0], [0, 0, 1, 0], [], []>} : vector<40x8xf32>, vector<1x8xf32>, vector<40x1xf32> -> vector<40x1xf32>
    %78 = arith.subf %35, %77 : vector<40x1xf32>
    %79 = math.exp %78 : vector<40x1xf32>
    %80 = vector.broadcast %79 : vector<40x1xf32> to vector<40x32xf32>
    %81 = arith.mulf %80, %66 : vector<40x32xf32>
    %82 = tpu.concatenate %81, %79 in 1 : vector<40x32xf32>, vector<40x1xf32> -> vector<40x33xf32>
    %cst_32 = arith.constant dense<0.000000e+00> : vector<33x8xf32>
    %83 = tpu.matmul %82, %24, %cst_32 {dimension_numbers = #tpu.dot_dimension_numbers<[0], [0], [1], [1], [0, 1, 1, 1], [], []>} : vector<40x33xf32>, vector<40x8xf32>, vector<33x8xf32> -> vector<33x8xf32>
    %c0_33 = arith.constant 0 : index
    %c0_34 = arith.constant 0 : index
    %84 = vector.load %arg17[%c0_33, %c0_34] : memref<32x8xf32, #tpu.memory_space<vmem>>, vector<32x8xf32>
    %85 = vector.broadcast %76 : vector<1x8xf32> to vector<32x8xf32>
    %86 = arith.mulf %85, %84 : vector<32x8xf32>
    %87 = vector.extract_strided_slice %83 {offsets = [0, 0], sizes = [32, 8], strides = [1, 1]} : vector<33x8xf32> to vector<32x8xf32>
    %88 = arith.addf %86, %87 : vector<32x8xf32>
    %c0_35 = arith.constant 0 : index
    %c0_36 = arith.constant 0 : index
    %89 = vector.load %arg17[%c0_35, %c0_36] : memref<32x8xf32, #tpu.memory_space<vmem>>, vector<32x8xf32>
    tpu.vector_store %arg17[%c0_35, %c0_36], %88 {strides = array<i32>} : memref<32x8xf32, #tpu.memory_space<vmem>>, vector<32x8xf32>,
    %c0_37 = arith.constant 0 : index
    %c0_38 = arith.constant 0 : index
    %90 = vector.load %arg16[%c0_37, %c0_38] : memref<1x8xf32, #tpu.memory_space<vmem>>, vector<1x8xf32>
    %91 = arith.mulf %76, %90 : vector<1x8xf32>
    %92 = vector.extract_strided_slice %83 {offsets = [32, 0], sizes = [1, 8], strides = [1, 1]} : vector<33x8xf32> to vector<1x8xf32>
    %93 = arith.addf %91, %92 : vector<1x8xf32>
    %c0_39 = arith.constant 0 : index
    %c0_40 = arith.constant 0 : index
    %94 = vector.load %arg16[%c0_39, %c0_40] : memref<1x8xf32, #tpu.memory_space<vmem>>, vector<1x8xf32>
    tpu.vector_store %arg16[%c0_39, %c0_40], %93 {strides = array<i32>} : memref<1x8xf32, #tpu.memory_space<vmem>>, vector<1x8xf32>,
    %c0_41 = arith.constant 0 : index
    %c0_42 = arith.constant 0 : index
    %95 = vector.load %arg15[%c0_41, %c0_42] : memref<1x8xf32, #tpu.memory_space<vmem>>, vector<1x8xf32>
    tpu.vector_store %arg15[%c0_41, %c0_42], %74 {strides = array<i32>} : memref<1x8xf32, #tpu.memory_space<vmem>>, vector<1x8xf32>,
    %c0_i32_43 = arith.constant 0 : i32
    %96 = arith.cmpi eq, %arg0, %c0_i32_43 : i32
    %97 = arith.extui %96 : i1 to i32
    %c0_i32_44 = arith.constant 0 : i32
    %98 = arith.cmpi ne, %97, %c0_i32_44 : i32
    scf.if %98 {
      %c0_45 = arith.constant 0 : index
      %c0_46 = arith.constant 0 : index
      %99 = vector.load %arg6[%c0_45, %c0_46] : memref<32x128xf32, #tpu.memory_space<vmem>>, vector<32x128xf32>
      %c0_47 = arith.constant 0 : index
      %c0_48 = arith.constant 0 : index
      %100 = vector.load %arg7[%c0_47, %c0_48] : memref<1x128xf32, #tpu.memory_space<vmem>>, vector<1x128xf32>
      %c0_49 = arith.constant 0 : index
      %c0_50 = arith.constant 0 : index
      %101 = vector.load %arg13[%c0_49, %c0_50] : memref<1x8xf32, #tpu.memory_space<vmem>>, vector<1x8xf32>
      %cst_51 = arith.constant 0.000000e+00 : f32
      %102 = vector.broadcast %cst_51 : f32 to vector<1x8xf32>
      %103 = arith.cmpf ogt, %101, %102 : vector<1x8xf32>
      %cst_52 = arith.constant 1.000000e+00 : f32
      %104 = vector.broadcast %cst_52 : f32 to vector<1x8xf32>
      %105 = arith.select %103, %101, %104 : vector<1x8xi1>, vector<1x8xf32>
      %106 = tpu.reciprocal %105 {approx = true} : vector<1x8xf32> -> vector<1x8xf32>
      %c0_53 = arith.constant 0 : index
      %c0_54 = arith.constant 0 : index
      %107 = vector.load %arg14[%c0_53, %c0_54] : memref<32x8xf32, #tpu.memory_space<vmem>>, vector<32x8xf32>
      %108 = vector.broadcast %106 : vector<1x8xf32> to vector<32x8xf32>
      %109 = arith.mulf %107, %108 : vector<32x8xf32>
      %cst_55 = arith.constant dense<0.000000e+00> : vector<8x128xf32>
      %110 = tpu.matmul %109, %99, %cst_55 {dimension_numbers = #tpu.dot_dimension_numbers<[0], [0], [1], [1], [0, 1, 1, 1], [], []>} : vector<32x8xf32>, vector<32x128xf32>, vector<8x128xf32> -> vector<8x128xf32>
      %111 = vector.broadcast %100 : vector<1x128xf32> to vector<8x128xf32>
      %112 = arith.addf %110, %111 : vector<8x128xf32>
      %cst_56 = arith.constant 0.000000e+00 : f32
      %113 = vector.broadcast %cst_56 : f32 to vector<8x128xf32>
      %114 = arith.cmpf ogt, %112, %113 : vector<8x128xf32>
      %cst_57 = arith.constant 0.00999999977 : f32
      %115 = vector.broadcast %cst_57 : f32 to vector<8x128xf32>
      %116 = arith.mulf %115, %112 : vector<8x128xf32>
      %117 = arith.select %114, %112, %116 : vector<8x128xi1>, vector<8x128xf32>
      %c0_58 = arith.constant 0 : index
      %c0_59 = arith.constant 0 : index
      %118 = vector.load %arg8[%c0_58, %c0_59] : memref<8x128xf32, #tpu.memory_space<vmem>>, vector<8x128xf32>
      tpu.vector_store %arg8[%c0_58, %c0_59], %117 {strides = array<i32>} : memref<8x128xf32, #tpu.memory_space<vmem>>, vector<8x128xf32>,
      %c0_60 = arith.constant 0 : index
      %c0_61 = arith.constant 0 : index
      %119 = vector.load %arg16[%c0_60, %c0_61] : memref<1x8xf32, #tpu.memory_space<vmem>>, vector<1x8xf32>
      %cst_62 = arith.constant 0.000000e+00 : f32
      %120 = vector.broadcast %cst_62 : f32 to vector<1x8xf32>
      %121 = arith.cmpf ogt, %119, %120 : vector<1x8xf32>
      %cst_63 = arith.constant 1.000000e+00 : f32
      %122 = vector.broadcast %cst_63 : f32 to vector<1x8xf32>
      %123 = arith.select %121, %119, %122 : vector<1x8xi1>, vector<1x8xf32>
      %124 = tpu.reciprocal %123 {approx = true} : vector<1x8xf32> -> vector<1x8xf32>
      %c0_64 = arith.constant 0 : index
      %c0_65 = arith.constant 0 : index
      %125 = vector.load %arg17[%c0_64, %c0_65] : memref<32x8xf32, #tpu.memory_space<vmem>>, vector<32x8xf32>
      %126 = vector.broadcast %124 : vector<1x8xf32> to vector<32x8xf32>
      %127 = arith.mulf %125, %126 : vector<32x8xf32>
      %cst_66 = arith.constant dense<0.000000e+00> : vector<8x128xf32>
      %128 = tpu.matmul %127, %99, %cst_66 {dimension_numbers = #tpu.dot_dimension_numbers<[0], [0], [1], [1], [0, 1, 1, 1], [], []>} : vector<32x8xf32>, vector<32x128xf32>, vector<8x128xf32> -> vector<8x128xf32>
      %129 = vector.broadcast %100 : vector<1x128xf32> to vector<8x128xf32>
      %130 = arith.addf %128, %129 : vector<8x128xf32>
      %cst_67 = arith.constant 0.000000e+00 : f32
      %131 = vector.broadcast %cst_67 : f32 to vector<8x128xf32>
      %132 = arith.cmpf ogt, %130, %131 : vector<8x128xf32>
      %cst_68 = arith.constant 0.00999999977 : f32
      %133 = vector.broadcast %cst_68 : f32 to vector<8x128xf32>
      %134 = arith.mulf %133, %130 : vector<8x128xf32>
      %135 = arith.select %132, %130, %134 : vector<8x128xi1>, vector<8x128xf32>
      %c0_69 = arith.constant 0 : index
      %c0_70 = arith.constant 0 : index
      %136 = vector.load %arg9[%c0_69, %c0_70] : memref<8x128xf32, #tpu.memory_space<vmem>>, vector<8x128xf32>
      tpu.vector_store %arg9[%c0_69, %c0_70], %135 {strides = array<i32>} : memref<8x128xf32, #tpu.memory_space<vmem>>, vector<8x128xf32>,
    } else {
    }
    return
  }
  func.func @transform_0(%arg0: i32) -> (i32, i32) {
    %c0_i32 = arith.constant 0 : i32
    %c0_i32_0 = arith.constant 0 : i32
    return %arg0, %c0_i32 : i32, i32
  }
  func.func @transform_1(%arg0: i32) -> (i32, i32) {
    %c0_i32 = arith.constant 0 : i32
    %c0_i32_0 = arith.constant 0 : i32
    return %arg0, %c0_i32 : i32, i32
  }
  func.func @transform_2(%arg0: i32) -> (i32, i32) {
    %c0_i32 = arith.constant 0 : i32
    %c0_i32_0 = arith.constant 0 : i32
    %c0_i32_1 = arith.constant 0 : i32
    return %c0_i32, %c0_i32_0 : i32, i32
  }
  func.func @transform_3(%arg0: i32) -> (i32, i32) {
    %c0_i32 = arith.constant 0 : i32
    %c0_i32_0 = arith.constant 0 : i32
    %c0_i32_1 = arith.constant 0 : i32
    return %c0_i32, %c0_i32_0 : i32, i32
  }
  func.func @transform_4(%arg0: i32) -> (i32, i32) {
    %c0_i32 = arith.constant 0 : i32
    %c0_i32_0 = arith.constant 0 : i32
    %c0_i32_1 = arith.constant 0 : i32
    return %c0_i32, %c0_i32_0 : i32, i32
  }
  func.func @transform_5(%arg0: i32) -> (i32, i32) {
    %c0_i32 = arith.constant 0 : i32
    %c0_i32_0 = arith.constant 0 : i32
    %c0_i32_1 = arith.constant 0 : i32
    return %c0_i32, %c0_i32_0 : i32, i32
  }
  func.func @transform_6(%arg0: i32) -> (i32, i32) {
    %c0_i32 = arith.constant 0 : i32
    %c0_i32_0 = arith.constant 0 : i32
    %c0_i32_1 = arith.constant 0 : i32
    return %c0_i32, %c0_i32_0 : i32, i32
  }
  func.func @transform_7(%arg0: i32) -> (i32, i32) {
    %c0_i32 = arith.constant 0 : i32
    %c0_i32_0 = arith.constant 0 : i32
    %c0_i32_1 = arith.constant 0 : i32
    return %c0_i32, %c0_i32_0 : i32, i32
  }
  func.func @transform_8(%arg0: i32) -> (i32, i32) {
    %c0_i32 = arith.constant 0 : i32
    %c0_i32_0 = arith.constant 0 : i32
    %c0_i32_1 = arith.constant 0 : i32
    return %c0_i32, %c0_i32_0 : i32, i32
  }
}

</mosaic_0001>

<llo_original>
// kernel: tpu_custom_call.1
$region0: #{tpu_custom_call.1}
  #allocation0 [shape = 'u32[]', space=smem, size = 0x4, offset = 0x4, fixed_abs, tag = 'smem constant byte address 0x4 - core index']
  #allocation1 [shape = 'u32[144,128]{1,0:T(1,128)}', space=vmem, size = 0x12000, scoped, tag = 'internal scratch']
  #allocation2 [shape = 'f32[8,64]{1,0:T(8,128)}', space=vmem, size = 0x1000, scoped, tag = 'scratch operand']
  #allocation3 [shape = 'f32[8,64]{1,0:T(8,128)}', space=vmem, size = 0x1000, scoped, tag = 'scratch operand']
  #allocation4 [shape = 'f32[1,8]{1,0:T(1,128)}', space=vmem, size = 0x200, scoped, tag = 'scratch operand']
  #allocation5 [shape = 'f32[1,8]{1,0:T(1,128)}', space=vmem, size = 0x200, scoped, tag = 'scratch operand']
  #allocation6 [shape = 'f32[32,8]{1,0:T(8,128)}', space=vmem, size = 0x4000, scoped, tag = 'scratch operand']
  #allocation7 [shape = 'f32[1,8]{1,0:T(1,128)}', space=vmem, size = 0x200, scoped, tag = 'scratch operand']
  #allocation8 [shape = 'f32[1,8]{1,0:T(1,128)}', space=vmem, size = 0x200, scoped, tag = 'scratch operand']
  #allocation9 [shape = 'f32[32,8]{1,0:T(8,128)}', space=vmem, size = 0x4000, scoped, tag = 'scratch operand']
  %s0 = inlined_call_operand.vmem [shape: s32[40,1], index: 0, kind: input, shape index: {}]
  %s1 = inlined_call_operand.vmem [shape: s32[40,1], index: 1, kind: input, shape index: {}]
  %s2 = inlined_call_operand.vmem [shape: f32[8,32], index: 2, kind: input, shape index: {}]
  %s3 = inlined_call_operand.vmem [shape: f32[8,32], index: 3, kind: input, shape index: {}]
  %s4 = inlined_call_operand.vmem [shape: f32[32,64], index: 4, kind: input, shape index: {}]
  %s5 = inlined_call_operand.vmem [shape: f32[32,128], index: 5, kind: input, shape index: {}]
  %s6 = inlined_call_operand.vmem [shape: f32[1,128], index: 6, kind: input, shape index: {}]
  %s7 = inlined_call_operand.hbm [shape: f32[8,128], index: 7, kind: output, shape index: {0}]
  %s8 = inlined_call_operand.hbm [shape: f32[8,128], index: 8, kind: output, shape index: {1}]
  %9 = xla_tuple %s7, %s8
  %s10 = sld [smem:[#allocation0]]
  $region54: #{tpu_custom_call.1} parent=0
    _
  %s12 = ssub.s32 1, %s10
  %s13 = scalar_select 0, %s12, %s10
  $region1: #{tpu_custom_call.1} parent=0
    #allocation10 [shape = 'u8[4096]{0}', space=vmem, size = 0x1000, scoped, tag = 'output window, operand 0, single buffered']
    #allocation11 [shape = 's32[1]{0}', space=sflag, size = 0x4, scoped, tag = 'scoped memory for tpu_custom_call.1']
    #allocation12 [shape = 'u8[4096]{0}', space=vmem, size = 0x1000, scoped, tag = 'output window, operand 1, single buffered']
    #allocation13 [shape = 's32[1]{0}', space=sflag, size = 0x4, scoped, tag = 'scoped memory for tpu_custom_call.1']
    %14 = vsyncpa [#allocation11], 0
    %15 = vsyncpa [#allocation13], 0
    // Predicated region
    $region2: #{tpu_custom_call.1} parent=1 // pred_check
      _
    $region3: #{tpu_custom_call.1} parent=1 // pred_check_branch
      %17 = sbr.rel (0) target = $region5
    $region4: #{tpu_custom_call.1} parent=1 // pred_region
      _
    $region5: #{tpu_custom_call.1} parent=1 // pred_fallthru
      _
    // Predicated region
    $region6: #{tpu_custom_call.1} parent=1 // pred_check
      _
    $region7: #{tpu_custom_call.1} parent=1 // pred_check_branch
      %19 = sbr.rel (0) target = $region9
    $region8: #{tpu_custom_call.1} parent=1 // pred_region
      _
    $region9: #{tpu_custom_call.1} parent=1 // pred_fallthru
      _
    // Predicated region
    $region10: #{tpu_custom_call.1} parent=1 // pred_check
      _
    $region11: #{tpu_custom_call.1} parent=1 // pred_check_branch
      %21 = sbr.rel (0) target = $region13
    $region12: #{tpu_custom_call.1} parent=1 // pred_region
      _
    $region13: #{tpu_custom_call.1} parent=1 // pred_fallthru
      _
    // Predicated region
    $region14: #{tpu_custom_call.1} parent=1 // pred_check
      _
    $region15: #{tpu_custom_call.1} parent=1 // pred_check_branch
      %23 = sbr.rel (0) target = $region17
    $region16: #{tpu_custom_call.1} parent=1 // pred_region
      _
    $region17: #{tpu_custom_call.1} parent=1 // pred_fallthru
      _
    // Predicated region
    $region18: #{tpu_custom_call.1} parent=1 // pred_check
      _
    $region19: #{tpu_custom_call.1} parent=1 // pred_check_branch
      %25 = sbr.rel (0) target = $region21
    $region20: #{tpu_custom_call.1} parent=1 // pred_region
      _
    $region21: #{tpu_custom_call.1} parent=1 // pred_fallthru
      _
    // Predicated region
    $region22: #{tpu_custom_call.1} parent=1 // pred_check
      _
    $region23: #{tpu_custom_call.1} parent=1 // pred_check_branch
      %27 = sbr.rel (0) target = $region25
    $region24: #{tpu_custom_call.1} parent=1 // pred_region
      _
    $region25: #{tpu_custom_call.1} parent=1 // pred_fallthru
      _
    // Predicated region
    $region26: #{tpu_custom_call.1} parent=1 // pred_check
      _
    $region27: #{tpu_custom_call.1} parent=1 // pred_check_branch
      %29 = sbr.rel (0) target = $region29
    $region28: #{tpu_custom_call.1} parent=1 // pred_region
      _
    $region29: #{tpu_custom_call.1} parent=1 // pred_fallthru
      _
    %p30 = scmp.eq.s32.totalorder 0, 0
    // Predicated region
    $region30: #{tpu_custom_call.1} parent=1 // pred_check
      %p31 = pneg %p30
    $region31: #{tpu_custom_call.1} parent=1 // pred_check_branch
      %33 = sbr.rel (%p31) target = $region33
    $region32: #{tpu_custom_call.1} parent=1 // pred_region
      %v34 = vld [vmem:[%s4] sm:$0xff]
      %v35 = vld [vmem:[%s4 + $0x8] sm:$0xff]
      %v36 = vld [vmem:[%s4 + $0x10] sm:$0xff]
      %v37 = vld [vmem:[%s4 + $0x18] sm:$0xff]
      %v38 = vld [vmem:[%s2] sm:$0xff]
      %vm39 = vcmask 261120
      %v41 = vsel %vm39, %v38, 0
      %43 = vmatprep.subr.mxu0 0.0
      %44 = vmatpush1.msra.mxu0 0.0
      %45 = vmatprep.subr.mxu0 0.0
      %46 = vmatpush1.msra.mxu0 0.0
      %47 = vmatprep.subr.mxu0 0.0
      %48 = vmatpush1.msra.mxu0 0.0
      %49 = vmatprep.subr.mxu0 0.0
      %50 = vmatpush1.msra.mxu0 0.0
      %51 = vmatprep.subr.mxu0 0.0
      %52 = vmatpush1.msra.mxu0 0.0
      %53 = vmatprep.subr.mxu0 0.0
      %54 = vmatpush1.msra.mxu0 0.0
      %55 = vmatprep.subr.mxu0 0.0
      %56 = vmatpush1.msra.mxu0 0.0
      %57 = vmatprep.subr.mxu0 0.0
      %58 = vmatpush1.msra.mxu0 0.0
      %59 = vmatprep.subr.mxu0 0.0
      %60 = vmatpush1.msra.mxu0 0.0
      %61 = vmatprep.subr.mxu0 0.0
      %62 = vmatpush1.msra.mxu0 0.0
      %63 = vmatprep.subr.mxu0 0.0
      %64 = vmatpush1.msra.mxu0 0.0
      %65 = vmatprep.subr.mxu0 0.0
      %66 = vmatpush1.msra.mxu0 0.0
      %67 = vmatprep.subr.mxu0 0.0
      %68 = vmatpush1.msra.mxu0 %v37
      %69 = vmatprep.subr.mxu0 0.0
      %70 = vmatpush1.msra.mxu0 %v36
      %71 = vmatprep.subr.mxu0 0.0
      %72 = vmatpush1.msra.mxu0 %v35
      %73 = vmatprep.subr.mxu0 0.0
      %74 = vmatpush1.msra.mxu0 %v34
      %75 = vmatprep.subr.mxu0 0.0
      %76 = vmatpush2.msra.mxu0 0.0
      %77 = vmatprep.subr.mxu0 0.0
      %78 = vmatpush2.msra.mxu0 0.0
      %79 = vmatprep.subr.mxu0 0.0
      %80 = vmatpush2.msra.mxu0 0.0
      %81 = vmatprep.subr.mxu0 0.0
      %82 = vmatpush2.msra.mxu0 0.0
      %83 = vmatprep.subr.mxu0 0.0
      %84 = vmatpush2.msra.mxu0 0.0
      %85 = vmatprep.subr.mxu0 0.0
      %86 = vmatpush2.msra.mxu0 0.0
      %87 = vmatprep.subr.mxu0 0.0
      %88 = vmatpush2.msra.mxu0 0.0
      %89 = vmatprep.subr.mxu0 0.0
      %90 = vmatpush2.msra.mxu0 0.0
      %91 = vmatprep.subr.mxu0 0.0
      %92 = vmatpush2.msra.mxu0 0.0
      %93 = vmatprep.subr.mxu0 0.0
      %94 = vmatpush2.msra.mxu0 0.0
      %95 = vmatprep.subr.mxu0 0.0
      %96 = vmatpush2.msra.mxu0 0.0
      %97 = vmatprep.subr.mxu0 0.0
      %98 = vmatpush2.msra.mxu0 0.0
      %99 = vmatprep.subr.mxu0 0.0
      %100 = vmatpush2.msra.mxu0 0.0
      %101 = vmatprep.subr.mxu0 0.0
      %102 = vmatpush2.msra.mxu0 0.0
      %103 = vmatprep.subr.mxu0 0.0
      %104 = vmatpush2.msra.mxu0 0.0
      %105 = vmatprep.subr.mxu0 0.0
      %106 = vmatpush2.msra.mxu0 0.0
      %107 = vmatprep.mubr.f32.mxu0 0.0
      %108 = vmatmul.mubr.f32.gmra.mxu0 %v41
      %v109 = vpop.f32.mrf.mxu0
      %v110 = vadd.f32 0.0, %v109
      %v111 = vpop.f32.mrf.mxu0
      %112 = vdwg.mxu0
      %vm113 = vcmask 523264
      %114 = vst.msk [vmem:[#allocation2] sm:$0xff] %vm113, %v110
      %v115 = vld [vmem:[%s3] sm:$0xff]
      %v117 = vsel %vm39, %v115, 0
      %119 = vmatprep.subr.mxu0 0.0
      %120 = vmatpush1.msra.mxu0 0.0
      %121 = vmatprep.subr.mxu0 0.0
      %122 = vmatpush1.msra.mxu0 0.0
      %123 = vmatprep.subr.mxu0 0.0
      %124 = vmatpush1.msra.mxu0 0.0
      %125 = vmatprep.subr.mxu0 0.0
      %126 = vmatpush1.msra.mxu0 0.0
      %127 = vmatprep.subr.mxu0 0.0
      %128 = vmatpush1.msra.mxu0 0.0
      %129 = vmatprep.subr.mxu0 0.0
      %130 = vmatpush1.msra.mxu0 0.0
      %131 = vmatprep.subr.mxu0 0.0
      %132 = vmatpush1.msra.mxu0 0.0
      %133 = vmatprep.subr.mxu0 0.0
      %134 = vmatpush1.msra.mxu0 0.0
      %135 = vmatprep.subr.mxu0 0.0
      %136 = vmatpush1.msra.mxu0 0.0
      %137 = vmatprep.subr.mxu0 0.0
      %138 = vmatpush1.msra.mxu0 0.0
      %139 = vmatprep.subr.mxu0 0.0
      %140 = vmatpush1.msra.mxu0 0.0
      %141 = vmatprep.subr.mxu0 0.0
      %142 = vmatpush1.msra.mxu0 0.0
      %143 = vmatprep.subr.mxu0 0.0
      %144 = vmatpush1.msra.mxu0 %v37
      %145 = vmatprep.subr.mxu0 0.0
      %146 = vmatpush1.msra.mxu0 %v36
      %147 = vmatprep.subr.mxu0 0.0
      %148 = vmatpush1.msra.mxu0 %v35
      %149 = vmatprep.subr.mxu0 0.0
      %150 = vmatpush1.msra.mxu0 %v34
      %151 = vmatprep.subr.mxu0 0.0
      %152 = vmatpush2.msra.mxu0 0.0
      %153 = vmatprep.subr.mxu0 0.0
      %154 = vmatpush2.msra.mxu0 0.0
      %155 = vmatprep.subr.mxu0 0.0
      %156 = vmatpush2.msra.mxu0 0.0
      %157 = vmatprep.subr.mxu0 0.0
      %158 = vmatpush2.msra.mxu0 0.0
      %159 = vmatprep.subr.mxu0 0.0
      %160 = vmatpush2.msra.mxu0 0.0
      %161 = vmatprep.subr.mxu0 0.0
      %162 = vmatpush2.msra.mxu0 0.0
      %163 = vmatprep.subr.mxu0 0.0
      %164 = vmatpush2.msra.mxu0 0.0
      %165 = vmatprep.subr.mxu0 0.0
      %166 = vmatpush2.msra.mxu0 0.0
      %167 = vmatprep.subr.mxu0 0.0
      %168 = vmatpush2.msra.mxu0 0.0
      %169 = vmatprep.subr.mxu0 0.0
      %170 = vmatpush2.msra.mxu0 0.0
      %171 = vmatprep.subr.mxu0 0.0
      %172 = vmatpush2.msra.mxu0 0.0
      %173 = vmatprep.subr.mxu0 0.0
      %174 = vmatpush2.msra.mxu0 0.0
      %175 = vmatprep.subr.mxu0 0.0
      %176 = vmatpush2.msra.mxu0 0.0
      %177 = vmatprep.subr.mxu0 0.0
      %178 = vmatpush2.msra.mxu0 0.0
      %179 = vmatprep.subr.mxu0 0.0
      %180 = vmatpush2.msra.mxu0 0.0
      %181 = vmatprep.subr.mxu0 0.0
      %182 = vmatpush2.msra.mxu0 0.0
      %183 = vmatprep.mubr.f32.mxu0 0.0
      %184 = vmatmul.mubr.f32.gmra.mxu0 %v117
      %v185 = vpop.f32.mrf.mxu0
      %v186 = vadd.f32 0.0, %v185
      %v187 = vpop.f32.mrf.mxu0
      %188 = vdwg.mxu0
      %189 = vst.msk [vmem:[#allocation3] sm:$0xff] %vm113, %v186
      %vm190 = vcmask 57344
      %191 = vst.msk [vmem:[#allocation4] sm:$0x1] %vm190, -1e+30
      %192 = vst.msk [vmem:[#allocation7] sm:$0x1] %vm190, -1e+30
      %193 = vst.msk [vmem:[#allocation5] sm:$0x1] %vm190, 0.0
      %194 = vst.msk [vmem:[#allocation8] sm:$0x1] %vm190, 0.0
      %vm195 = vcmask 64512
      %196 = vst.msk [vmem:[#allocation6] sm:$0xff] %vm195, 0.0
      %197 = vst.msk [vmem:[#allocation6 + $0x8] sm:$0xff] %vm195, 0.0
      %198 = vst.msk [vmem:[#allocation6 + $0x10] sm:$0xff] %vm195, 0.0
      %199 = vst.msk [vmem:[#allocation6 + $0x18] sm:$0xff] %vm195, 0.0
      %200 = vst.msk [vmem:[#allocation9] sm:$0xff] %vm195, 0.0
      %201 = vst.msk [vmem:[#allocation9 + $0x8] sm:$0xff] %vm195, 0.0
      %202 = vst.msk [vmem:[#allocation9 + $0x10] sm:$0xff] %vm195, 0.0
      %203 = vst.msk [vmem:[#allocation9 + $0x18] sm:$0xff] %vm195, 0.0
    $region33: #{tpu_custom_call.1} parent=1 // pred_fallthru
      _
    %v204 = vld [vmem:[%s0] sm:$0xff]
    %v205 = vld [vmem:[%s0 + $0x8] sm:$0xff]
    %v206 = vld [vmem:[%s0 + $0x10] sm:$0xff]
    %v207 = vld [vmem:[%s0 + $0x18] sm:$0xff]
    %v208 = vld [vmem:[%s0 + $0x20] sm:$0xff]
    %v209 = vld [vmem:[%s1] sm:$0xff]
    %v210 = vld [vmem:[%s1 + $0x8] sm:$0xff]
    %v211 = vld [vmem:[%s1 + $0x10] sm:$0xff]
    %v212 = vld [vmem:[%s1 + $0x18] sm:$0xff]
    %v213 = vld [vmem:[%s1 + $0x20] sm:$0xff]
    %s214 = smul.u32 0, 40
    %v215 = vlaneseq
    %v216 = vshrl.u32 %v215, 7
    %v217 = vadd.s32 %v216, 8
    %v218 = vadd.s32 %v216, 16
    %v219 = vadd.s32 %v216, 24
    %v220 = vadd.s32 %v216, 32
    %v221 = vstv %s214
    %v222 = vadd.s32 %v221, %v216
    %v223 = vadd.s32 %v221, %v217
    %v224 = vadd.s32 %v221, %v218
    %v225 = vadd.s32 %v221, %v219
    %v226 = vadd.s32 %v221, %v220
    %vm227 = vcmp.lt.s32.totalorder %v222, 37
    %vm228 = vcmp.lt.s32.totalorder %v223, 37
    %vm229 = vcmp.lt.s32.totalorder %v224, 37
    %vm230 = vcmp.lt.s32.totalorder %v225, 37
    %vm231 = vcmp.lt.s32.totalorder %v226, 37
    %v232 = vlaneseq
    %v233 = vand.u32 %v232, 127
    %234 = vset.pattern.permute.xlu0 0
    %235 = vperm.xlu0 %234, %v204
    %v236 = vpop.permute.xlu0 %235
    %237 = vset.pattern.permute.xlu0 0
    %238 = vperm.xlu0 %237, %v205
    %v239 = vpop.permute.xlu0 %238
    %240 = vset.pattern.permute.xlu0 0
    %241 = vperm.xlu0 %240, %v206
    %v242 = vpop.permute.xlu0 %241
    %243 = vset.pattern.permute.xlu0 0
    %244 = vperm.xlu0 %243, %v207
    %v245 = vpop.permute.xlu0 %244
    %246 = vset.pattern.permute.xlu0 0
    %247 = vperm.xlu0 %246, %v208
    %v248 = vpop.permute.xlu0 %247
    %vm249 = vcmp.eq.s32.totalorder %v233, %v236
    %vm250 = vcmp.eq.s32.totalorder %v233, %v239
    %vm251 = vcmp.eq.s32.totalorder %v233, %v242
    %vm252 = vcmp.eq.s32.totalorder %v233, %v245
    %vm253 = vcmp.eq.s32.totalorder %v233, %v248
    %v254 = vsel %vm227, 1, 0
    %v255 = vsel %vm228, 1, 0
    %v256 = vsel %vm229, 1, 0
    %v257 = vsel %vm230, 1, 0
    %v258 = vsel %vm231, 1, 0
    %vm259 = vcmp.eq.s32.totalorder %v254, 1
    %vm260 = vcmp.eq.s32.totalorder %v255, 1
    %vm261 = vcmp.eq.s32.totalorder %v256, 1
    %vm262 = vcmp.eq.s32.totalorder %v257, 1
    %vm263 = vcmp.eq.s32.totalorder %v258, 1
    %vm264 = vmand %vm249, %vm259
    %vm265 = vmand %vm250, %vm260
    %vm266 = vmand %vm251, %vm261
    %vm267 = vmand %vm252, %vm262
    %vm268 = vmand %vm253, %vm263
    %269 = vset.pattern.permute.xlu0 0
    %270 = vperm.xlu0 %269, %v209
    %v271 = vpop.permute.xlu0 %270
    %272 = vset.pattern.permute.xlu0 0
    %273 = vperm.xlu0 %272, %v210
    %v274 = vpop.permute.xlu0 %273
    %275 = vset.pattern.permute.xlu0 0
    %276 = vperm.xlu0 %275, %v211
    %v277 = vpop.permute.xlu0 %276
    %278 = vset.pattern.permute.xlu0 0
    %279 = vperm.xlu0 %278, %v212
    %v280 = vpop.permute.xlu0 %279
    %281 = vset.pattern.permute.xlu0 0
    %282 = vperm.xlu0 %281, %v213
    %v283 = vpop.permute.xlu0 %282
    %vm284 = vcmp.eq.s32.totalorder %v233, %v271
    %vm285 = vcmp.eq.s32.totalorder %v233, %v274
    %vm286 = vcmp.eq.s32.totalorder %v233, %v277
    %vm287 = vcmp.eq.s32.totalorder %v233, %v280
    %vm288 = vcmp.eq.s32.totalorder %v233, %v283
    %vm289 = vmand %vm284, %vm259
    %vm290 = vmand %vm285, %vm260
    %vm291 = vmand %vm286, %vm261
    %vm292 = vmand %vm287, %vm262
    %vm293 = vmand %vm288, %vm263
    %v294 = vsel %vm264, 1, 0
    %v295 = vsel %vm265, 1, 0
    %v296 = vsel %vm266, 1, 0
    %v297 = vsel %vm267, 1, 0
    %v298 = vsel %vm268, 1, 0
    %v299 = vcvt.s32.f32 %v294
    %v300 = vcvt.s32.f32 %v295
    %v301 = vcvt.s32.f32 %v296
    %v302 = vcvt.s32.f32 %v297
    %v303 = vcvt.s32.f32 %v298
    %v304 = vsel %vm289, 1, 0
    %v305 = vsel %vm290, 1, 0
    %v306 = vsel %vm291, 1, 0
    %v307 = vsel %vm292, 1, 0
    %v308 = vsel %vm293, 1, 0
    %v309 = vcvt.s32.f32 %v304
    %v310 = vcvt.s32.f32 %v305
    %v311 = vcvt.s32.f32 %v306
    %v312 = vcvt.s32.f32 %v307
    %v313 = vcvt.s32.f32 %v308
    %v314 = vld [vmem:[#allocation2] sm:$0xff]
    %vm315 = vcmask 64512
    %v317 = vsel %vm315, %v299, 0
    %v320 = vsel %vm315, %v300, 0
    %v323 = vsel %vm315, %v301, 0
    %v326 = vsel %vm315, %v302, 0
    %v329 = vsel %vm315, %v303, 0
    %331 = vmatprep.subr.mxu0 0.0
    %332 = vmatpush1.msra.mxu0 0.0
    %333 = vmatprep.subr.mxu0 0.0
    %334 = vmatpush1.msra.mxu0 0.0
    %335 = vmatprep.subr.mxu0 0.0
    %336 = vmatpush1.msra.mxu0 0.0
    %337 = vmatprep.subr.mxu0 0.0
    %338 = vmatpush1.msra.mxu0 0.0
    %339 = vmatprep.subr.mxu0 0.0
    %340 = vmatpush1.msra.mxu0 0.0
    %341 = vmatprep.subr.mxu0 0.0
    %342 = vmatpush1.msra.mxu0 0.0
    %343 = vmatprep.subr.mxu0 0.0
    %344 = vmatpush1.msra.mxu0 0.0
    %345 = vmatprep.subr.mxu0 0.0
    %346 = vmatpush1.msra.mxu0 0.0
    %347 = vmatprep.subr.mxu0 0.0
    %348 = vmatpush1.msra.mxu0 0.0
    %349 = vmatprep.subr.mxu0 0.0
    %350 = vmatpush1.msra.mxu0 0.0
    %351 = vmatprep.subr.mxu0 0.0
    %352 = vmatpush1.msra.mxu0 0.0
    %353 = vmatprep.subr.mxu0 0.0
    %354 = vmatpush1.msra.mxu0 0.0
    %355 = vmatprep.subr.mxu0 0.0
    %356 = vmatpush1.msra.mxu0 0.0
    %357 = vmatprep.subr.mxu0 0.0
    %358 = vmatpush1.msra.mxu0 0.0
    %359 = vmatprep.subr.mxu0 0.0
    %360 = vmatpush1.msra.mxu0 0.0
    %361 = vmatprep.subr.mxu0 0.0
    %362 = vmatpush1.msra.mxu0 %v314
    %363 = vmatprep.subr.mxu0 0.0
    %364 = vmatpush2.msra.mxu0 0.0
    %365 = vmatprep.subr.mxu0 0.0
    %366 = vmatpush2.msra.mxu0 0.0
    %367 = vmatprep.subr.mxu0 0.0
    %368 = vmatpush2.msra.mxu0 0.0
    %369 = vmatprep.subr.mxu0 0.0
    %370 = vmatpush2.msra.mxu0 0.0
    %371 = vmatprep.subr.mxu0 0.0
    %372 = vmatpush2.msra.mxu0 0.0
    %373 = vmatprep.subr.mxu0 0.0
    %374 = vmatpush2.msra.mxu0 0.0
    %375 = vmatprep.subr.mxu0 0.0
    %376 = vmatpush2.msra.mxu0 0.0
    %377 = vmatprep.subr.mxu0 0.0
    %378 = vmatpush2.msra.mxu0 0.0
    %379 = vmatprep.subr.mxu0 0.0
    %380 = vmatpush2.msra.mxu0 0.0
    %381 = vmatprep.subr.mxu0 0.0
    %382 = vmatpush2.msra.mxu0 0.0
    %383 = vmatprep.subr.mxu0 0.0
    %384 = vmatpush2.msra.mxu0 0.0
    %385 = vmatprep.subr.mxu0 0.0
    %386 = vmatpush2.msra.mxu0 0.0
    %387 = vmatprep.subr.mxu0 0.0
    %388 = vmatpush2.msra.mxu0 0.0
    %389 = vmatprep.subr.mxu0 0.0
    %390 = vmatpush2.msra.mxu0 0.0
    %391 = vmatprep.subr.mxu0 0.0
    %392 = vmatpush2.msra.mxu0 0.0
    %393 = vmatprep.subr.mxu0 0.0
    %394 = vmatpush2.msra.mxu0 0.0
    %395 = vmatprep.mubr.f32.mxu0 0.0
    %396 = vmatmul.mubr.f32.gmra.mxu0 %v317
    %v397 = vpop.f32.mrf.mxu0
    %v398 = vadd.f32 0.0, %v397
    %v399 = vpop.f32.mrf.mxu0
    %400 = vmatprep.mubr.f32.mxu0 0.0
    %401 = vmatmul.mubr.f32.gmra.mxu0 %v320
    %v402 = vpop.f32.mrf.mxu0
    %v403 = vadd.f32 0.0, %v402
    %v404 = vpop.f32.mrf.mxu0
    %405 = vmatprep.mubr.f32.mxu0 0.0
    %406 = vmatmul.mubr.f32.gmra.mxu0 %v323
    %v407 = vpop.f32.mrf.mxu0
    %v408 = vadd.f32 0.0, %v407
    %v409 = vpop.f32.mrf.mxu0
    %410 = vmatprep.mubr.f32.mxu0 0.0
    %411 = vmatmul.mubr.f32.gmra.mxu0 %v326
    %v412 = vpop.f32.mrf.mxu0
    %v413 = vadd.f32 0.0, %v412
    %v414 = vpop.f32.mrf.mxu0
    %415 = vmatprep.mubr.f32.mxu0 0.0
    %416 = vmatmul.mubr.f32.gmra.mxu0 %v329
    %v417 = vpop.f32.mrf.mxu0
    %v418 = vadd.f32 0.0, %v417
    %v419 = vpop.f32.mrf.mxu0
    %420 = vdwg.mxu0
    %v421 = vld [vmem:[#allocation3] sm:$0xff]
    %v423 = vsel %vm315, %v309, 0
    %v426 = vsel %vm315, %v310, 0
    %v429 = vsel %vm315, %v311, 0
    %v432 = vsel %vm315, %v312, 0
    %v435 = vsel %vm315, %v313, 0
    %437 = vmatprep.subr.mxu0 0.0
    %438 = vmatpush1.msra.mxu0 0.0
    %439 = vmatprep.subr.mxu0 0.0
    %440 = vmatpush1.msra.mxu0 0.0
    %441 = vmatprep.subr.mxu0 0.0
    %442 = vmatpush1.msra.mxu0 0.0
    %443 = vmatprep.subr.mxu0 0.0
    %444 = vmatpush1.msra.mxu0 0.0
    %445 = vmatprep.subr.mxu0 0.0
    %446 = vmatpush1.msra.mxu0 0.0
    %447 = vmatprep.subr.mxu0 0.0
    %448 = vmatpush1.msra.mxu0 0.0
    %449 = vmatprep.subr.mxu0 0.0
    %450 = vmatpush1.msra.mxu0 0.0
    %451 = vmatprep.subr.mxu0 0.0
    %452 = vmatpush1.msra.mxu0 0.0
    %453 = vmatprep.subr.mxu0 0.0
    %454 = vmatpush1.msra.mxu0 0.0
    %455 = vmatprep.subr.mxu0 0.0
    %456 = vmatpush1.msra.mxu0 0.0
    %457 = vmatprep.subr.mxu0 0.0
    %458 = vmatpush1.msra.mxu0 0.0
    %459 = vmatprep.subr.mxu0 0.0
    %460 = vmatpush1.msra.mxu0 0.0
    %461 = vmatprep.subr.mxu0 0.0
    %462 = vmatpush1.msra.mxu0 0.0
    %463 = vmatprep.subr.mxu0 0.0
    %464 = vmatpush1.msra.mxu0 0.0
    %465 = vmatprep.subr.mxu0 0.0
    %466 = vmatpush1.msra.mxu0 0.0
    %467 = vmatprep.subr.mxu0 0.0
    %468 = vmatpush1.msra.mxu0 %v421
    %469 = vmatprep.subr.mxu0 0.0
    %470 = vmatpush2.msra.mxu0 0.0
    %471 = vmatprep.subr.mxu0 0.0
    %472 = vmatpush2.msra.mxu0 0.0
    %473 = vmatprep.subr.mxu0 0.0
    %474 = vmatpush2.msra.mxu0 0.0
    %475 = vmatprep.subr.mxu0 0.0
    %476 = vmatpush2.msra.mxu0 0.0
    %477 = vmatprep.subr.mxu0 0.0
    %478 = vmatpush2.msra.mxu0 0.0
    %479 = vmatprep.subr.mxu0 0.0
    %480 = vmatpush2.msra.mxu0 0.0
    %481 = vmatprep.subr.mxu0 0.0
    %482 = vmatpush2.msra.mxu0 0.0
    %483 = vmatprep.subr.mxu0 0.0
    %484 = vmatpush2.msra.mxu0 0.0
    %485 = vmatprep.subr.mxu0 0.0
    %486 = vmatpush2.msra.mxu0 0.0
    %487 = vmatprep.subr.mxu0 0.0
    %488 = vmatpush2.msra.mxu0 0.0
    %489 = vmatprep.subr.mxu0 0.0
    %490 = vmatpush2.msra.mxu0 0.0
    %491 = vmatprep.subr.mxu0 0.0
    %492 = vmatpush2.msra.mxu0 0.0
    %493 = vmatprep.subr.mxu0 0.0
    %494 = vmatpush2.msra.mxu0 0.0
    %495 = vmatprep.subr.mxu0 0.0
    %496 = vmatpush2.msra.mxu0 0.0
    %497 = vmatprep.subr.mxu0 0.0
    %498 = vmatpush2.msra.mxu0 0.0
    %499 = vmatprep.subr.mxu0 0.0
    %500 = vmatpush2.msra.mxu0 0.0
    %501 = vmatprep.mubr.f32.mxu0 0.0
    %502 = vmatmul.mubr.f32.gmra.mxu0 %v423
    %v503 = vpop.f32.mrf.mxu0
    %v504 = vadd.f32 0.0, %v503
    %v505 = vpop.f32.mrf.mxu0
    %506 = vmatprep.mubr.f32.mxu0 0.0
    %507 = vmatmul.mubr.f32.gmra.mxu0 %v426
    %v508 = vpop.f32.mrf.mxu0
    %v509 = vadd.f32 0.0, %v508
    %v510 = vpop.f32.mrf.mxu0
    %511 = vmatprep.mubr.f32.mxu0 0.0
    %512 = vmatmul.mubr.f32.gmra.mxu0 %v429
    %v513 = vpop.f32.mrf.mxu0
    %v514 = vadd.f32 0.0, %v513
    %v515 = vpop.f32.mrf.mxu0
    %516 = vmatprep.mubr.f32.mxu0 0.0
    %517 = vmatmul.mubr.f32.gmra.mxu0 %v432
    %v518 = vpop.f32.mrf.mxu0
    %v519 = vadd.f32 0.0, %v518
    %v520 = vpop.f32.mrf.mxu0
    %521 = vmatprep.mubr.f32.mxu0 0.0
    %522 = vmatmul.mubr.f32.gmra.mxu0 %v435
    %v523 = vpop.f32.mrf.mxu0
    %v524 = vadd.f32 0.0, %v523
    %v525 = vpop.f32.mrf.mxu0
    %526 = vdwg.mxu0
    %v527 = vmul.f32 %v398, %v504
    %v528 = vmul.f32 %v403, %v509
    %v529 = vmul.f32 %v408, %v514
    %v530 = vmul.f32 %v413, %v519
    %v531 = vmul.f32 %v418, %v524
    %vm532 = vcmask 261120
    %v533 = vsel %vm532, %v527, 0.0
    %534 = vadd.xlane.f32.xlu0 %v533
    %v535 = vpop.xlane.xlu0 %534
    %v536 = vsel %vm532, %v528, 0.0
    %537 = vadd.xlane.f32.xlu0 %v536
    %v538 = vpop.xlane.xlu0 %537
    %v539 = vsel %vm532, %v529, 0.0
    %540 = vadd.xlane.f32.xlu0 %v539
    %v541 = vpop.xlane.xlu0 %540
    %v542 = vsel %vm532, %v530, 0.0
    %543 = vadd.xlane.f32.xlu0 %v542
    %v544 = vpop.xlane.xlu0 %543
    %v545 = vsel %vm532, %v531, 0.0
    %546 = vadd.xlane.f32.xlu0 %v545
    %v547 = vpop.xlane.xlu0 %546
    %v548 = vmul.f32 %v535, 0.17677669
    %v549 = vmul.f32 %v538, 0.17677669
    %v550 = vmul.f32 %v541, 0.17677669
    %v551 = vmul.f32 %v544, 0.17677669
    %v552 = vmul.f32 %v547, 0.17677669
    %v553 = vsel %vm264, %v548, -1e+30
    %v554 = vsel %vm265, %v549, -1e+30
    %v555 = vsel %vm266, %v550, -1e+30
    %v556 = vsel %vm267, %v551, -1e+30
    %v557 = vsel %vm268, %v552, -1e+30
    %v558 = vsel %vm315, %v553, -inf
    %v559 = vsel %vm315, %v554, -inf
    %v560 = vsel %vm315, %v555, -inf
    %v561 = vsel %vm315, %v556, -inf
    %v562 = vsel %vm315, %v557, -inf
    %v563 = vmax.f32 %v558, %v562
    %v564 = vmax.f32 %v563, %v559
    %v565 = vmax.f32 %v560, %v561
    %v566 = vmax.f32 %v564, %v565
    %v567 = vrot.slane %v566, 4
    %v568 = vmax.f32 %v566, %v567
    %v569 = vrot.slane %v568, 2
    %v570 = vmax.f32 %v568, %v569
    %v571 = vrot.slane %v570, 1
    %v572 = vmax.f32 %v570, %v571
    %v573 = vld [vmem:[#allocation4] sm:$0x1]
    %v574 = vmax.f32 %v573, %v572
    %v575 = vsub.f32 %v573, %v574
    %v576 = vmul.f32 %v575, 1.442695
    %v577 = vpow.pop %v576
    %v579 = vlaneseq
    %v580 = vshrl.u32 %v579, 7
    %v581 = vsub.s32 0, %v580
    %v582 = vrot.slane %v574, %v581
    %v584 = vmul.f32 %v299, %v582
    %v585 = vmul.f32 %v300, %v582
    %v586 = vmul.f32 %v301, %v582
    %v587 = vmul.f32 %v302, %v582
    %v588 = vmul.f32 %v303, %v582
    %v589 = vsel %vm315, %v584, 0.0
    %590 = vadd.xlane.f32.xlu0 %v589
    %v591 = vpop.xlane.xlu0 %590
    %v592 = vsel %vm315, %v585, 0.0
    %593 = vadd.xlane.f32.xlu0 %v592
    %v594 = vpop.xlane.xlu0 %593
    %v595 = vsel %vm315, %v586, 0.0
    %596 = vadd.xlane.f32.xlu0 %v595
    %v597 = vpop.xlane.xlu0 %596
    %v598 = vsel %vm315, %v587, 0.0
    %599 = vadd.xlane.f32.xlu0 %v598
    %v600 = vpop.xlane.xlu0 %599
    %v601 = vsel %vm315, %v588, 0.0
    %602 = vadd.xlane.f32.xlu0 %v601
    %v603 = vpop.xlane.xlu0 %602
    %v604 = vsub.f32 %v548, %v591
    %v605 = vsub.f32 %v549, %v594
    %v606 = vsub.f32 %v550, %v597
    %v607 = vsub.f32 %v551, %v600
    %v608 = vsub.f32 %v552, %v603
    %v609 = vmul.f32 %v604, 1.442695
    %v610 = vpow.pop %v609
    %v611 = vmul.f32 %v605, 1.442695
    %v612 = vpow.pop %v611
    %v613 = vmul.f32 %v606, 1.442695
    %v614 = vpow.pop %v613
    %v615 = vmul.f32 %v607, 1.442695
    %v616 = vpow.pop %v615
    %v617 = vmul.f32 %v608, 1.442695
    %v618 = vpow.pop %v617
    %v619 = vmul.f32 %v610, %v504
    %v620 = vmul.f32 %v612, %v509
    %v621 = vmul.f32 %v614, %v514
    %v622 = vmul.f32 %v616, %v519
    %v623 = vmul.f32 %v618, %v524
    %629 = vrot.lane.b32.xlu0 %v619, 96
    %v630 = vpop.permute.xlu0 %629
    %631 = vrot.lane.b32.xlu0 %v620, 96
    %v632 = vpop.permute.xlu0 %631
    %633 = vrot.lane.b32.xlu0 %v621, 96
    %v634 = vpop.permute.xlu0 %633
    %635 = vrot.lane.b32.xlu0 %v622, 96
    %v636 = vpop.permute.xlu0 %635
    %637 = vrot.lane.b32.xlu0 %v623, 96
    %v638 = vpop.permute.xlu0 %637
    %v644 = vsel %vm532, %v630, %v610
    %v645 = vsel %vm532, %v632, %v612
    %v646 = vsel %vm532, %v634, %v614
    %v647 = vsel %vm532, %v636, %v616
    %v648 = vsel %vm532, %v638, %v618
    %649 = vxpose.xlu0.b32.start [1/16] %v644, 128
    %650 = vxpose.xlu0.b32.cont [2/16] %v645, 128
    %651 = vxpose.xlu0.b32.cont [3/16] %v646, 128
    %652 = vxpose.xlu0.b32.cont [4/16] %v647, 128
    %653 = vxpose.xlu0.b32.cont [5/16] %v648, 128
    %654 = vxpose.xlu0.b32.cont [6/16] 0.0, 128
    %655 = vxpose.xlu0.b32.cont [7/16] 0.0, 128
    %656 = vxpose.xlu0.b32.cont [8/16] 0.0, 128
    %657 = vxpose.xlu0.b32.cont [9/16] 0.0, 128
    %658 = vxpose.xlu0.b32.cont [10/16] 0.0, 128
    %659 = vxpose.xlu0.b32.cont [11/16] 0.0, 128
    %660 = vxpose.xlu0.b32.cont [12/16] 0.0, 128
    %661 = vxpose.xlu0.b32.cont [13/16] 0.0, 128
    %662 = vxpose.xlu0.b32.cont [14/16] 0.0, 128
    %663 = vxpose.xlu0.b32.cont [15/16] 0.0, 128
    %664 = vxpose.xlu0.b32.end [16/16] 0.0, 128
    %v665 = vpop.trf.xlu0
    %v666 = vpop.trf.xlu0
    %v667 = vpop.trf.xlu0
    %v668 = vpop.trf.xlu0
    %v669 = vpop.trf.xlu0
    %v670 = vpop.trf.xlu0
    %v671 = vpop.trf.xlu0
    %v672 = vpop.trf.xlu0
    %v673 = vpop.trf.xlu0
    %v674 = vpop.trf.xlu0
    %v675 = vpop.trf.xlu0
    %v676 = vpop.trf.xlu0
    %v677 = vpop.trf.xlu0
    %v678 = vpop.trf.xlu0
    %v679 = vpop.trf.xlu0
    %v680 = vpop.trf.xlu0
    %vm681 = vcmask 326656
    %v683 = vsel %vm681, %v665, 0
    %v686 = vsel %vm681, %v666, 0
    %v689 = vsel %vm681, %v667, 0
    %v692 = vsel %vm681, %v668, 0
    %v695 = vsel %vm681, %v669, 0
    %697 = vmatprep.subr.mxu0 0.0
    %698 = vmatpush1.msra.mxu0 0.0
    %699 = vmatprep.subr.mxu0 0.0
    %700 = vmatpush1.msra.mxu0 0.0
    %701 = vmatprep.subr.mxu0 0.0
    %702 = vmatpush1.msra.mxu0 0.0
    %703 = vmatprep.subr.mxu0 0.0
    %704 = vmatpush1.msra.mxu0 0.0
    %705 = vmatprep.subr.mxu0 0.0
    %706 = vmatpush1.msra.mxu0 0.0
    %707 = vmatprep.subr.mxu0 0.0
    %708 = vmatpush1.msra.mxu0 0.0
    %709 = vmatprep.subr.mxu0 0.0
    %710 = vmatpush1.msra.mxu0 0.0
    %711 = vmatprep.subr.mxu0 0.0
    %712 = vmatpush1.msra.mxu0 0.0
    %713 = vmatprep.subr.mxu0 0.0
    %714 = vmatpush1.msra.mxu0 0.0
    %715 = vmatprep.subr.mxu0 0.0
    %716 = vmatpush1.msra.mxu0 0.0
    %717 = vmatprep.subr.mxu0 0.0
    %718 = vmatpush1.msra.mxu0 0.0
    %719 = vmatprep.subr.mxu0 0.0
    %720 = vmatpush1.msra.mxu0 %v303
    %721 = vmatprep.subr.mxu0 0.0
    %722 = vmatpush1.msra.mxu0 %v302
    %723 = vmatprep.subr.mxu0 0.0
    %724 = vmatpush1.msra.mxu0 %v301
    %725 = vmatprep.subr.mxu0 0.0
    %726 = vmatpush1.msra.mxu0 %v300
    %727 = vmatprep.subr.mxu0 0.0
    %728 = vmatpush1.msra.mxu0 %v299
    %729 = vmatprep.subr.mxu0 0.0
    %730 = vmatpush2.msra.mxu0 0.0
    %731 = vmatprep.subr.mxu0 0.0
    %732 = vmatpush2.msra.mxu0 0.0
    %733 = vmatprep.subr.mxu0 0.0
    %734 = vmatpush2.msra.mxu0 0.0
    %735 = vmatprep.subr.mxu0 0.0
    %736 = vmatpush2.msra.mxu0 0.0
    %737 = vmatprep.subr.mxu0 0.0
    %738 = vmatpush2.msra.mxu0 0.0
    %739 = vmatprep.subr.mxu0 0.0
    %740 = vmatpush2.msra.mxu0 0.0
    %741 = vmatprep.subr.mxu0 0.0
    %742 = vmatpush2.msra.mxu0 0.0
    %743 = vmatprep.subr.mxu0 0.0
    %744 = vmatpush2.msra.mxu0 0.0
    %745 = vmatprep.subr.mxu0 0.0
    %746 = vmatpush2.msra.mxu0 0.0
    %747 = vmatprep.subr.mxu0 0.0
    %748 = vmatpush2.msra.mxu0 0.0
    %749 = vmatprep.subr.mxu0 0.0
    %750 = vmatpush2.msra.mxu0 0.0
    %751 = vmatprep.subr.mxu0 0.0
    %752 = vmatpush2.msra.mxu0 0.0
    %753 = vmatprep.subr.mxu0 0.0
    %754 = vmatpush2.msra.mxu0 0.0
    %755 = vmatprep.subr.mxu0 0.0
    %756 = vmatpush2.msra.mxu0 0.0
    %757 = vmatprep.subr.mxu0 0.0
    %758 = vmatpush2.msra.mxu0 0.0
    %759 = vmatprep.subr.mxu0 0.0
    %760 = vmatpush2.msra.mxu0 0.0
    %761 = vmatprep.mubr.f32.mxu0 0.0
    %762 = vmatmul.mubr.f32.gmra.mxu0 %v683
    %v763 = vpop.f32.mrf.mxu0
    %v764 = vadd.f32 0.0, %v763
    %v765 = vpop.f32.mrf.mxu0
    %766 = vmatprep.mubr.f32.mxu0 0.0
    %767 = vmatmul.mubr.f32.gmra.mxu0 %v686
    %v768 = vpop.f32.mrf.mxu0
    %v769 = vadd.f32 0.0, %v768
    %v770 = vpop.f32.mrf.mxu0
    %771 = vmatprep.mubr.f32.mxu0 0.0
    %772 = vmatmul.mubr.f32.gmra.mxu0 %v689
    %v773 = vpop.f32.mrf.mxu0
    %v774 = vadd.f32 0.0, %v773
    %v775 = vpop.f32.mrf.mxu0
    %776 = vmatprep.mubr.f32.mxu0 0.0
    %777 = vmatmul.mubr.f32.gmra.mxu0 %v692
    %v778 = vpop.f32.mrf.mxu0
    %v779 = vadd.f32 0.0, %v778
    %v780 = vpop.f32.mrf.mxu0
    %781 = vmatprep.mubr.f32.mxu0 0.0
    %782 = vmatmul.mubr.f32.gmra.mxu0 %v695
    %v783 = vpop.f32.mrf.mxu0
    %v784 = vadd.f32 0.0, %v783
    %v785 = vpop.f32.mrf.mxu0
    %786 = vdwg.mxu0
    %v787 = vld [vmem:[#allocation6] sm:$0xff]
    %v788 = vld [vmem:[#allocation6 + $0x8] sm:$0xff]
    %v789 = vld [vmem:[#allocation6 + $0x10] sm:$0xff]
    %v790 = vld [vmem:[#allocation6 + $0x18] sm:$0xff]
    %v792 = vlaneseq
    %v793 = vshrl.u32 %v792, 7
    %v794 = vsub.s32 0, %v793
    %v795 = vrot.slane %v577, %v794
    %v797 = vmul.f32 %v795, %v787
    %v798 = vmul.f32 %v795, %v788
    %v799 = vmul.f32 %v795, %v789
    %v800 = vmul.f32 %v795, %v790
    %v801 = vadd.f32 %v797, %v764
    %v802 = vadd.f32 %v798, %v769
    %v803 = vadd.f32 %v799, %v774
    %v804 = vadd.f32 %v800, %v779
    %805 = vst.msk [vmem:[#allocation6] sm:$0xff] %vm315, %v801
    %806 = vst.msk [vmem:[#allocation6 + $0x8] sm:$0xff] %vm315, %v802
    %807 = vst.msk [vmem:[#allocation6 + $0x10] sm:$0xff] %vm315, %v803
    %808 = vst.msk [vmem:[#allocation6 + $0x18] sm:$0xff] %vm315, %v804
    %v809 = vld [vmem:[#allocation5] sm:$0x1]
    %v810 = vmul.f32 %v577, %v809
    %v811 = vadd.f32 %v810, %v784
    %vm812 = vcmask 57344
    %813 = vst.msk [vmem:[#allocation5] sm:$0x1] %vm812, %v811
    %814 = vst.msk [vmem:[#allocation4] sm:$0x1] %vm812, %v574
    %v815 = vsel %vm289, %v548, -1e+30
    %v816 = vsel %vm290, %v549, -1e+30
    %v817 = vsel %vm291, %v550, -1e+30
    %v818 = vsel %vm292, %v551, -1e+30
    %v819 = vsel %vm293, %v552, -1e+30
    %v820 = vsel %vm315, %v815, -inf
    %v821 = vsel %vm315, %v816, -inf
    %v822 = vsel %vm315, %v817, -inf
    %v823 = vsel %vm315, %v818, -inf
    %v824 = vsel %vm315, %v819, -inf
    %v825 = vmax.f32 %v820, %v824
    %v826 = vmax.f32 %v825, %v821
    %v827 = vmax.f32 %v822, %v823
    %v828 = vmax.f32 %v826, %v827
    %v829 = vrot.slane %v828, 4
    %v830 = vmax.f32 %v828, %v829
    %v831 = vrot.slane %v830, 2
    %v832 = vmax.f32 %v830, %v831
    %v833 = vrot.slane %v832, 1
    %v834 = vmax.f32 %v832, %v833
    %v835 = vld [vmem:[#allocation7] sm:$0x1]
    %v836 = vmax.f32 %v835, %v834
    %v837 = vsub.f32 %v835, %v836
    %v838 = vmul.f32 %v837, 1.442695
    %v839 = vpow.pop %v838
    %v841 = vlaneseq
    %v842 = vshrl.u32 %v841, 7
    %v843 = vsub.s32 0, %v842
    %v844 = vrot.slane %v836, %v843
    %v846 = vmul.f32 %v309, %v844
    %v847 = vmul.f32 %v310, %v844
    %v848 = vmul.f32 %v311, %v844
    %v849 = vmul.f32 %v312, %v844
    %v850 = vmul.f32 %v313, %v844
    %v851 = vsel %vm315, %v846, 0.0
    %852 = vadd.xlane.f32.xlu0 %v851
    %v853 = vpop.xlane.xlu0 %852
    %v854 = vsel %vm315, %v847, 0.0
    %855 = vadd.xlane.f32.xlu0 %v854
    %v856 = vpop.xlane.xlu0 %855
    %v857 = vsel %vm315, %v848, 0.0
    %858 = vadd.xlane.f32.xlu0 %v857
    %v859 = vpop.xlane.xlu0 %858
    %v860 = vsel %vm315, %v849, 0.0
    %861 = vadd.xlane.f32.xlu0 %v860
    %v862 = vpop.xlane.xlu0 %861
    %v863 = vsel %vm315, %v850, 0.0
    %864 = vadd.xlane.f32.xlu0 %v863
    %v865 = vpop.xlane.xlu0 %864
    %v866 = vsub.f32 %v548, %v853
    %v867 = vsub.f32 %v549, %v856
    %v868 = vsub.f32 %v550, %v859
    %v869 = vsub.f32 %v551, %v862
    %v870 = vsub.f32 %v552, %v865
    %v871 = vmul.f32 %v866, 1.442695
    %v872 = vpow.pop %v871
    %v873 = vmul.f32 %v867, 1.442695
    %v874 = vpow.pop %v873
    %v875 = vmul.f32 %v868, 1.442695
    %v876 = vpow.pop %v875
    %v877 = vmul.f32 %v869, 1.442695
    %v878 = vpow.pop %v877
    %v879 = vmul.f32 %v870, 1.442695
    %v880 = vpow.pop %v879
    %v881 = vmul.f32 %v872, %v398
    %v882 = vmul.f32 %v874, %v403
    %v883 = vmul.f32 %v876, %v408
    %v884 = vmul.f32 %v878, %v413
    %v885 = vmul.f32 %v880, %v418
    %891 = vrot.lane.b32.xlu0 %v881, 96
    %v892 = vpop.permute.xlu0 %891
    %893 = vrot.lane.b32.xlu0 %v882, 96
    %v894 = vpop.permute.xlu0 %893
    %895 = vrot.lane.b32.xlu0 %v883, 96
    %v896 = vpop.permute.xlu0 %895
    %897 = vrot.lane.b32.xlu0 %v884, 96
    %v898 = vpop.permute.xlu0 %897
    %899 = vrot.lane.b32.xlu0 %v885, 96
    %v900 = vpop.permute.xlu0 %899
    %v906 = vsel %vm532, %v892, %v872
    %v907 = vsel %vm532, %v894, %v874
    %v908 = vsel %vm532, %v896, %v876
    %v909 = vsel %vm532, %v898, %v878
    %v910 = vsel %vm532, %v900, %v880
    %911 = vxpose.xlu0.b32.start [1/16] %v906, 128
    %912 = vxpose.xlu0.b32.cont [2/16] %v907, 128
    %913 = vxpose.xlu0.b32.cont [3/16] %v908, 128
    %914 = vxpose.xlu0.b32.cont [4/16] %v909, 128
    %915 = vxpose.xlu0.b32.cont [5/16] %v910, 128
    %916 = vxpose.xlu0.b32.cont [6/16] 0.0, 128
    %917 = vxpose.xlu0.b32.cont [7/16] 0.0, 128
    %918 = vxpose.xlu0.b32.cont [8/16] 0.0, 128
    %919 = vxpose.xlu0.b32.cont [9/16] 0.0, 128
    %920 = vxpose.xlu0.b32.cont [10/16] 0.0, 128
    %921 = vxpose.xlu0.b32.cont [11/16] 0.0, 128
    %922 = vxpose.xlu0.b32.cont [12/16] 0.0, 128
    %923 = vxpose.xlu0.b32.cont [13/16] 0.0, 128
    %924 = vxpose.xlu0.b32.cont [14/16] 0.0, 128
    %925 = vxpose.xlu0.b32.cont [15/16] 0.0, 128
    %926 = vxpose.xlu0.b32.end [16/16] 0.0, 128
    %v927 = vpop.trf.xlu0
    %v928 = vpop.trf.xlu0
    %v929 = vpop.trf.xlu0
    %v930 = vpop.trf.xlu0
    %v931 = vpop.trf.xlu0
    %v932 = vpop.trf.xlu0
    %v933 = vpop.trf.xlu0
    %v934 = vpop.trf.xlu0
    %v935 = vpop.trf.xlu0
    %v936 = vpop.trf.xlu0
    %v937 = vpop.trf.xlu0
    %v938 = vpop.trf.xlu0
    %v939 = vpop.trf.xlu0
    %v940 = vpop.trf.xlu0
    %v941 = vpop.trf.xlu0
    %v942 = vpop.trf.xlu0
    %v944 = vsel %vm681, %v927, 0
    %v947 = vsel %vm681, %v928, 0
    %v950 = vsel %vm681, %v929, 0
    %v953 = vsel %vm681, %v930, 0
    %v956 = vsel %vm681, %v931, 0
    %958 = vmatprep.subr.mxu0 0.0
    %959 = vmatpush1.msra.mxu0 0.0
    %960 = vmatprep.subr.mxu0 0.0
    %961 = vmatpush1.msra.mxu0 0.0
    %962 = vmatprep.subr.mxu0 0.0
    %963 = vmatpush1.msra.mxu0 0.0
    %964 = vmatprep.subr.mxu0 0.0
    %965 = vmatpush1.msra.mxu0 0.0
    %966 = vmatprep.subr.mxu0 0.0
    %967 = vmatpush1.msra.mxu0 0.0
    %968 = vmatprep.subr.mxu0 0.0
    %969 = vmatpush1.msra.mxu0 0.0
    %970 = vmatprep.subr.mxu0 0.0
    %971 = vmatpush1.msra.mxu0 0.0
    %972 = vmatprep.subr.mxu0 0.0
    %973 = vmatpush1.msra.mxu0 0.0
    %974 = vmatprep.subr.mxu0 0.0
    %975 = vmatpush1.msra.mxu0 0.0
    %976 = vmatprep.subr.mxu0 0.0
    %977 = vmatpush1.msra.mxu0 0.0
    %978 = vmatprep.subr.mxu0 0.0
    %979 = vmatpush1.msra.mxu0 0.0
    %980 = vmatprep.subr.mxu0 0.0
    %981 = vmatpush1.msra.mxu0 %v313
    %982 = vmatprep.subr.mxu0 0.0
    %983 = vmatpush1.msra.mxu0 %v312
    %984 = vmatprep.subr.mxu0 0.0
    %985 = vmatpush1.msra.mxu0 %v311
    %986 = vmatprep.subr.mxu0 0.0
    %987 = vmatpush1.msra.mxu0 %v310
    %988 = vmatprep.subr.mxu0 0.0
    %989 = vmatpush1.msra.mxu0 %v309
    %990 = vmatprep.subr.mxu0 0.0
    %991 = vmatpush2.msra.mxu0 0.0
    %992 = vmatprep.subr.mxu0 0.0
    %993 = vmatpush2.msra.mxu0 0.0
    %994 = vmatprep.subr.mxu0 0.0
    %995 = vmatpush2.msra.mxu0 0.0
    %996 = vmatprep.subr.mxu0 0.0
    %997 = vmatpush2.msra.mxu0 0.0
    %998 = vmatprep.subr.mxu0 0.0
    %999 = vmatpush2.msra.mxu0 0.0
    %1000 = vmatprep.subr.mxu0 0.0
    %1001 = vmatpush2.msra.mxu0 0.0
    %1002 = vmatprep.subr.mxu0 0.0
    %1003 = vmatpush2.msra.mxu0 0.0
    %1004 = vmatprep.subr.mxu0 0.0
    %1005 = vmatpush2.msra.mxu0 0.0
    %1006 = vmatprep.subr.mxu0 0.0
    %1007 = vmatpush2.msra.mxu0 0.0
    %1008 = vmatprep.subr.mxu0 0.0
    %1009 = vmatpush2.msra.mxu0 0.0
    %1010 = vmatprep.subr.mxu0 0.0
    %1011 = vmatpush2.msra.mxu0 0.0
    %1012 = vmatprep.subr.mxu0 0.0
    %1013 = vmatpush2.msra.mxu0 0.0
    %1014 = vmatprep.subr.mxu0 0.0
    %1015 = vmatpush2.msra.mxu0 0.0
    %1016 = vmatprep.subr.mxu0 0.0
    %1017 = vmatpush2.msra.mxu0 0.0
    %1018 = vmatprep.subr.mxu0 0.0
    %1019 = vmatpush2.msra.mxu0 0.0
    %1020 = vmatprep.subr.mxu0 0.0
    %1021 = vmatpush2.msra.mxu0 0.0
    %1022 = vmatprep.mubr.f32.mxu0 0.0
    %1023 = vmatmul.mubr.f32.gmra.mxu0 %v944
    %v1024 = vpop.f32.mrf.mxu0
    %v1025 = vadd.f32 0.0, %v1024
    %v1026 = vpop.f32.mrf.mxu0
    %1027 = vmatprep.mubr.f32.mxu0 0.0
    %1028 = vmatmul.mubr.f32.gmra.mxu0 %v947
    %v1029 = vpop.f32.mrf.mxu0
    %v1030 = vadd.f32 0.0, %v1029
    %v1031 = vpop.f32.mrf.mxu0
    %1032 = vmatprep.mubr.f32.mxu0 0.0
    %1033 = vmatmul.mubr.f32.gmra.mxu0 %v950
    %v1034 = vpop.f32.mrf.mxu0
    %v1035 = vadd.f32 0.0, %v1034
    %v1036 = vpop.f32.mrf.mxu0
    %1037 = vmatprep.mubr.f32.mxu0 0.0
    %1038 = vmatmul.mubr.f32.gmra.mxu0 %v953
    %v1039 = vpop.f32.mrf.mxu0
    %v1040 = vadd.f32 0.0, %v1039
    %v1041 = vpop.f32.mrf.mxu0
    %1042 = vmatprep.mubr.f32.mxu0 0.0
    %1043 = vmatmul.mubr.f32.gmra.mxu0 %v956
    %v1044 = vpop.f32.mrf.mxu0
    %v1045 = vadd.f32 0.0, %v1044
    %v1046 = vpop.f32.mrf.mxu0
    %1047 = vdwg.mxu0
    %v1048 = vld [vmem:[#allocation9] sm:$0xff]
    %v1049 = vld [vmem:[#allocation9 + $0x8] sm:$0xff]
    %v1050 = vld [vmem:[#allocation9 + $0x10] sm:$0xff]
    %v1051 = vld [vmem:[#allocation9 + $0x18] sm:$0xff]
    %v1053 = vlaneseq
    %v1054 = vshrl.u32 %v1053, 7
    %v1055 = vsub.s32 0, %v1054
    %v1056 = vrot.slane %v839, %v1055
    %v1058 = vmul.f32 %v1056, %v1048
    %v1059 = vmul.f32 %v1056, %v1049
    %v1060 = vmul.f32 %v1056, %v1050
    %v1061 = vmul.f32 %v1056, %v1051
    %v1062 = vadd.f32 %v1058, %v1025
    %v1063 = vadd.f32 %v1059, %v1030
    %v1064 = vadd.f32 %v1060, %v1035
    %v1065 = vadd.f32 %v1061, %v1040
    %1066 = vst.msk [vmem:[#allocation9] sm:$0xff] %vm315, %v1062
    %1067 = vst.msk [vmem:[#allocation9 + $0x8] sm:$0xff] %vm315, %v1063
    %1068 = vst.msk [vmem:[#allocation9 + $0x10] sm:$0xff] %vm315, %v1064
    %1069 = vst.msk [vmem:[#allocation9 + $0x18] sm:$0xff] %vm315, %v1065
    %v1070 = vld [vmem:[#allocation8] sm:$0x1]
    %v1071 = vmul.f32 %v839, %v1070
    %v1072 = vadd.f32 %v1071, %v1045
    %1073 = vst.msk [vmem:[#allocation8] sm:$0x1] %vm812, %v1072
    %1074 = vst.msk [vmem:[#allocation7] sm:$0x1] %vm812, %v836
    // Predicated region
    $region34: #{tpu_custom_call.1} parent=1 // pred_check
      %p1075 = pneg %p30
    $region35: #{tpu_custom_call.1} parent=1 // pred_check_branch
      %1077 = sbr.rel (%p1075) target = $region37
    $region36: #{tpu_custom_call.1} parent=1 // pred_region
      %v1078 = vld [vmem:[%s5] sm:$0xff]
      %v1079 = vld [vmem:[%s5 + $0x8] sm:$0xff]
      %v1080 = vld [vmem:[%s5 + $0x10] sm:$0xff]
      %v1081 = vld [vmem:[%s5 + $0x18] sm:$0xff]
      %v1082 = vld [vmem:[%s6] sm:$0x1]
      %v1083 = vld [vmem:[#allocation5] sm:$0x1]
      %vm1084 = vcmp.gt.f32.partialorder %v1083, 0.0
      %v1085 = vsel %vm1084, %v1083, 1.0
      %v1086 = vrcp.pop %v1085
      %v1087 = vld [vmem:[#allocation6] sm:$0xff]
      %v1088 = vld [vmem:[#allocation6 + $0x8] sm:$0xff]
      %v1089 = vld [vmem:[#allocation6 + $0x10] sm:$0xff]
      %v1090 = vld [vmem:[#allocation6 + $0x18] sm:$0xff]
      %v1092 = vlaneseq
      %v1093 = vshrl.u32 %v1092, 7
      %v1094 = vsub.s32 0, %v1093
      %v1095 = vrot.slane %v1086, %v1094
      %v1097 = vmul.f32 %v1087, %v1095
      %v1098 = vmul.f32 %v1088, %v1095
      %v1099 = vmul.f32 %v1089, %v1095
      %v1100 = vmul.f32 %v1090, %v1095
      %v1102 = vlaneseq
      %v1103 = vshrl.u32 %v1102, 7
      %v1104 = vsub.s32 0, %v1103
      %v1105 = vrot.slane %v1082, %v1104
      %1107 = vxpose.xlu0.b32.start [1/16] %v1097, 128
      %1108 = vxpose.xlu0.b32.cont [2/16] %v1098, 128
      %1109 = vxpose.xlu0.b32.cont [3/16] %v1099, 128
      %1110 = vxpose.xlu0.b32.cont [4/16] %v1100, 128
      %1111 = vxpose.xlu0.b32.cont [5/16] 0.0, 128
      %1112 = vxpose.xlu0.b32.cont [6/16] 0.0, 128
      %1113 = vxpose.xlu0.b32.cont [7/16] 0.0, 128
      %1114 = vxpose.xlu0.b32.cont [8/16] 0.0, 128
      %1115 = vxpose.xlu0.b32.cont [9/16] 0.0, 128
      %1116 = vxpose.xlu0.b32.cont [10/16] 0.0, 128
      %1117 = vxpose.xlu0.b32.cont [11/16] 0.0, 128
      %1118 = vxpose.xlu0.b32.cont [12/16] 0.0, 128
      %1119 = vxpose.xlu0.b32.cont [13/16] 0.0, 128
      %1120 = vxpose.xlu0.b32.cont [14/16] 0.0, 128
      %1121 = vxpose.xlu0.b32.cont [15/16] 0.0, 128
      %1122 = vxpose.xlu0.b32.end [16/16] 0.0, 128
      %v1123 = vpop.trf.xlu0
      %v1124 = vpop.trf.xlu0
      %v1125 = vpop.trf.xlu0
      %v1126 = vpop.trf.xlu0
      %v1127 = vpop.trf.xlu0
      %v1128 = vpop.trf.xlu0
      %v1129 = vpop.trf.xlu0
      %v1130 = vpop.trf.xlu0
      %v1131 = vpop.trf.xlu0
      %v1132 = vpop.trf.xlu0
      %v1133 = vpop.trf.xlu0
      %v1134 = vpop.trf.xlu0
      %v1135 = vpop.trf.xlu0
      %v1136 = vpop.trf.xlu0
      %v1137 = vpop.trf.xlu0
      %v1138 = vpop.trf.xlu0
      %v1140 = vsel %vm532, %v1123, 0
      %1142 = vmatprep.subr.mxu0 0.0
      %1143 = vmatpush1.msra.mxu0 0.0
      %1144 = vmatprep.subr.mxu0 0.0
      %1145 = vmatpush1.msra.mxu0 0.0
      %1146 = vmatprep.subr.mxu0 0.0
      %1147 = vmatpush1.msra.mxu0 0.0
      %1148 = vmatprep.subr.mxu0 0.0
      %1149 = vmatpush1.msra.mxu0 0.0
      %1150 = vmatprep.subr.mxu0 0.0
      %1151 = vmatpush1.msra.mxu0 0.0
      %1152 = vmatprep.subr.mxu0 0.0
      %1153 = vmatpush1.msra.mxu0 0.0
      %1154 = vmatprep.subr.mxu0 0.0
      %1155 = vmatpush1.msra.mxu0 0.0
      %1156 = vmatprep.subr.mxu0 0.0
      %1157 = vmatpush1.msra.mxu0 0.0
      %1158 = vmatprep.subr.mxu0 0.0
      %1159 = vmatpush1.msra.mxu0 0.0
      %1160 = vmatprep.subr.mxu0 0.0
      %1161 = vmatpush1.msra.mxu0 0.0
      %1162 = vmatprep.subr.mxu0 0.0
      %1163 = vmatpush1.msra.mxu0 0.0
      %1164 = vmatprep.subr.mxu0 0.0
      %1165 = vmatpush1.msra.mxu0 0.0
      %1166 = vmatprep.subr.mxu0 0.0
      %1167 = vmatpush1.msra.mxu0 %v1081
      %1168 = vmatprep.subr.mxu0 0.0
      %1169 = vmatpush1.msra.mxu0 %v1080
      %1170 = vmatprep.subr.mxu0 0.0
      %1171 = vmatpush1.msra.mxu0 %v1079
      %1172 = vmatprep.subr.mxu0 0.0
      %1173 = vmatpush1.msra.mxu0 %v1078
      %1174 = vmatprep.subr.mxu0 0.0
      %1175 = vmatpush2.msra.mxu0 0.0
      %1176 = vmatprep.subr.mxu0 0.0
      %1177 = vmatpush2.msra.mxu0 0.0
      %1178 = vmatprep.subr.mxu0 0.0
      %1179 = vmatpush2.msra.mxu0 0.0
      %1180 = vmatprep.subr.mxu0 0.0
      %1181 = vmatpush2.msra.mxu0 0.0
      %1182 = vmatprep.subr.mxu0 0.0
      %1183 = vmatpush2.msra.mxu0 0.0
      %1184 = vmatprep.subr.mxu0 0.0
      %1185 = vmatpush2.msra.mxu0 0.0
      %1186 = vmatprep.subr.mxu0 0.0
      %1187 = vmatpush2.msra.mxu0 0.0
      %1188 = vmatprep.subr.mxu0 0.0
      %1189 = vmatpush2.msra.mxu0 0.0
      %1190 = vmatprep.subr.mxu0 0.0
      %1191 = vmatpush2.msra.mxu0 0.0
      %1192 = vmatprep.subr.mxu0 0.0
      %1193 = vmatpush2.msra.mxu0 0.0
      %1194 = vmatprep.subr.mxu0 0.0
      %1195 = vmatpush2.msra.mxu0 0.0
      %1196 = vmatprep.subr.mxu0 0.0
      %1197 = vmatpush2.msra.mxu0 0.0
      %1198 = vmatprep.subr.mxu0 0.0
      %1199 = vmatpush2.msra.mxu0 0.0
      %1200 = vmatprep.subr.mxu0 0.0
      %1201 = vmatpush2.msra.mxu0 0.0
      %1202 = vmatprep.subr.mxu0 0.0
      %1203 = vmatpush2.msra.mxu0 0.0
      %1204 = vmatprep.subr.mxu0 0.0
      %1205 = vmatpush2.msra.mxu0 0.0
      %1206 = vmatprep.mubr.f32.mxu0 0.0
      %1207 = vmatmul.mubr.f32.gmra.mxu0 %v1140
      %v1208 = vpop.f32.mrf.mxu0
      %v1209 = vadd.f32 %v1105, %v1208
      %v1210 = vpop.f32.mrf.mxu0
      %1211 = vdwg.mxu0
      %vm1212 = vcmp.gt.f32.partialorder %v1209, 0.0
      %v1213 = vmul.f32 %v1209, 0.01
      %v1214 = vsel %vm1212, %v1209, %v1213
      %1215 = vst [vmem:[#allocation10] sm:$0xff] %v1214
      %v1216 = vld [vmem:[#allocation8] sm:$0x1]
      %vm1217 = vcmp.gt.f32.partialorder %v1216, 0.0
      %v1218 = vsel %vm1217, %v1216, 1.0
      %v1219 = vrcp.pop %v1218
      %v1220 = vld [vmem:[#allocation9] sm:$0xff]
      %v1221 = vld [vmem:[#allocation9 + $0x8] sm:$0xff]
      %v1222 = vld [vmem:[#allocation9 + $0x10] sm:$0xff]
      %v1223 = vld [vmem:[#allocation9 + $0x18] sm:$0xff]
      %v1225 = vlaneseq
      %v1226 = vshrl.u32 %v1225, 7
      %v1227 = vsub.s32 0, %v1226
      %v1228 = vrot.slane %v1219, %v1227
      %v1230 = vmul.f32 %v1220, %v1228
      %v1231 = vmul.f32 %v1221, %v1228
      %v1232 = vmul.f32 %v1222, %v1228
      %v1233 = vmul.f32 %v1223, %v1228
      %1234 = vxpose.xlu0.b32.start [1/16] %v1230, 128
      %1235 = vxpose.xlu0.b32.cont [2/16] %v1231, 128
      %1236 = vxpose.xlu0.b32.cont [3/16] %v1232, 128
      %1237 = vxpose.xlu0.b32.cont [4/16] %v1233, 128
      %1238 = vxpose.xlu0.b32.cont [5/16] 0.0, 128
      %1239 = vxpose.xlu0.b32.cont [6/16] 0.0, 128
      %1240 = vxpose.xlu0.b32.cont [7/16] 0.0, 128
      %1241 = vxpose.xlu0.b32.cont [8/16] 0.0, 128
      %1242 = vxpose.xlu0.b32.cont [9/16] 0.0, 128
      %1243 = vxpose.xlu0.b32.cont [10/16] 0.0, 128
      %1244 = vxpose.xlu0.b32.cont [11/16] 0.0, 128
      %1245 = vxpose.xlu0.b32.cont [12/16] 0.0, 128
      %1246 = vxpose.xlu0.b32.cont [13/16] 0.0, 128
      %1247 = vxpose.xlu0.b32.cont [14/16] 0.0, 128
      %1248 = vxpose.xlu0.b32.cont [15/16] 0.0, 128
      %1249 = vxpose.xlu0.b32.end [16/16] 0.0, 128
      %v1250 = vpop.trf.xlu0
      %v1251 = vpop.trf.xlu0
      %v1252 = vpop.trf.xlu0
      %v1253 = vpop.trf.xlu0
      %v1254 = vpop.trf.xlu0
      %v1255 = vpop.trf.xlu0
      %v1256 = vpop.trf.xlu0
      %v1257 = vpop.trf.xlu0
      %v1258 = vpop.trf.xlu0
      %v1259 = vpop.trf.xlu0
      %v1260 = vpop.trf.xlu0
      %v1261 = vpop.trf.xlu0
      %v1262 = vpop.trf.xlu0
      %v1263 = vpop.trf.xlu0
      %v1264 = vpop.trf.xlu0
      %v1265 = vpop.trf.xlu0
      %v1267 = vsel %vm532, %v1250, 0
      %1269 = vmatprep.subr.mxu0 0.0
      %1270 = vmatpush1.msra.mxu0 0.0
      %1271 = vmatprep.subr.mxu0 0.0
      %1272 = vmatpush1.msra.mxu0 0.0
      %1273 = vmatprep.subr.mxu0 0.0
      %1274 = vmatpush1.msra.mxu0 0.0
      %1275 = vmatprep.subr.mxu0 0.0
      %1276 = vmatpush1.msra.mxu0 0.0
      %1277 = vmatprep.subr.mxu0 0.0
      %1278 = vmatpush1.msra.mxu0 0.0
      %1279 = vmatprep.subr.mxu0 0.0
      %1280 = vmatpush1.msra.mxu0 0.0
      %1281 = vmatprep.subr.mxu0 0.0
      %1282 = vmatpush1.msra.mxu0 0.0
      %1283 = vmatprep.subr.mxu0 0.0
      %1284 = vmatpush1.msra.mxu0 0.0
      %1285 = vmatprep.subr.mxu0 0.0
      %1286 = vmatpush1.msra.mxu0 0.0
      %1287 = vmatprep.subr.mxu0 0.0
      %1288 = vmatpush1.msra.mxu0 0.0
      %1289 = vmatprep.subr.mxu0 0.0
      %1290 = vmatpush1.msra.mxu0 0.0
      %1291 = vmatprep.subr.mxu0 0.0
      %1292 = vmatpush1.msra.mxu0 0.0
      %1293 = vmatprep.subr.mxu0 0.0
      %1294 = vmatpush1.msra.mxu0 %v1081
      %1295 = vmatprep.subr.mxu0 0.0
      %1296 = vmatpush1.msra.mxu0 %v1080
      %1297 = vmatprep.subr.mxu0 0.0
      %1298 = vmatpush1.msra.mxu0 %v1079
      %1299 = vmatprep.subr.mxu0 0.0
      %1300 = vmatpush1.msra.mxu0 %v1078
      %1301 = vmatprep.subr.mxu0 0.0
      %1302 = vmatpush2.msra.mxu0 0.0
      %1303 = vmatprep.subr.mxu0 0.0
      %1304 = vmatpush2.msra.mxu0 0.0
      %1305 = vmatprep.subr.mxu0 0.0
      %1306 = vmatpush2.msra.mxu0 0.0
      %1307 = vmatprep.subr.mxu0 0.0
      %1308 = vmatpush2.msra.mxu0 0.0
      %1309 = vmatprep.subr.mxu0 0.0
      %1310 = vmatpush2.msra.mxu0 0.0
      %1311 = vmatprep.subr.mxu0 0.0
      %1312 = vmatpush2.msra.mxu0 0.0
      %1313 = vmatprep.subr.mxu0 0.0
      %1314 = vmatpush2.msra.mxu0 0.0
      %1315 = vmatprep.subr.mxu0 0.0
      %1316 = vmatpush2.msra.mxu0 0.0
      %1317 = vmatprep.subr.mxu0 0.0
      %1318 = vmatpush2.msra.mxu0 0.0
      %1319 = vmatprep.subr.mxu0 0.0
      %1320 = vmatpush2.msra.mxu0 0.0
      %1321 = vmatprep.subr.mxu0 0.0
      %1322 = vmatpush2.msra.mxu0 0.0
      %1323 = vmatprep.subr.mxu0 0.0
      %1324 = vmatpush2.msra.mxu0 0.0
      %1325 = vmatprep.subr.mxu0 0.0
      %1326 = vmatpush2.msra.mxu0 0.0
      %1327 = vmatprep.subr.mxu0 0.0
      %1328 = vmatpush2.msra.mxu0 0.0
      %1329 = vmatprep.subr.mxu0 0.0
      %1330 = vmatpush2.msra.mxu0 0.0
      %1331 = vmatprep.subr.mxu0 0.0
      %1332 = vmatpush2.msra.mxu0 0.0
      %1333 = vmatprep.mubr.f32.mxu0 0.0
      %1334 = vmatmul.mubr.f32.gmra.mxu0 %v1267
      %v1335 = vpop.f32.mrf.mxu0
      %v1336 = vadd.f32 %v1105, %v1335
      %v1337 = vpop.f32.mrf.mxu0
      %1338 = vdwg.mxu0
      %vm1339 = vcmp.gt.f32.partialorder %v1336, 0.0
      %v1340 = vmul.f32 %v1336, 0.01
      %v1341 = vsel %vm1339, %v1336, %v1340
      %1342 = vst [vmem:[#allocation12] sm:$0xff] %v1341
    $region37: #{tpu_custom_call.1} parent=1 // pred_fallthru
      _
    // Predicated region
    $region38: #{tpu_custom_call.1} parent=1 // pred_check
      _
    $region39: #{tpu_custom_call.1} parent=1 // pred_check_branch
      %1344 = sbr.rel (0) target = $region41
    $region40: #{tpu_custom_call.1} parent=1 // pred_region
      %s1346 = ssub.s32 128, 128
      %1347 = vsyncadd [#allocation11], %s1346
      %s1349 = sshll.u32 [#allocation10], 4
      %s1350 = int_to_ptr.vmem [resolvable:$true] %s1349
      %1352 = dma.vmem_to_hbm [thread:$0]  %s1350, 128, %s7, [#allocation11]
    $region41: #{tpu_custom_call.1} parent=1 // pred_fallthru
      _
    // Predicated region
    $region42: #{tpu_custom_call.1} parent=1 // pred_check
      _
    $region43: #{tpu_custom_call.1} parent=1 // pred_check_branch
      %1354 = sbr.rel (0) target = $region45
    $region44: #{tpu_custom_call.1} parent=1 // pred_region
      %s1356 = ssub.s32 128, 128
      %1357 = vsyncadd [#allocation13], %s1356
      %s1359 = sshll.u32 [#allocation12], 4
      %s1360 = int_to_ptr.vmem [resolvable:$true] %s1359
      %1362 = dma.vmem_to_hbm [thread:$0]  %s1360, 128, %s8, [#allocation13]
    $region45: #{tpu_custom_call.1} parent=1 // pred_fallthru
      _
    // Predicated region
    $region46: #{tpu_custom_call.1} parent=1 // pred_check
      _
    $region47: #{tpu_custom_call.1} parent=1 // pred_check_branch
      %1364 = sbr.rel (0) target = $region49
    $region48: #{tpu_custom_call.1} parent=1 // pred_region
      %1365 = dma.done [#allocation11], 128
    $region49: #{tpu_custom_call.1} parent=1 // pred_fallthru
      _
    // Predicated region
    $region50: #{tpu_custom_call.1} parent=1 // pred_check
      _
    $region51: #{tpu_custom_call.1} parent=1 // pred_check_branch
      %1367 = sbr.rel (0) target = $region53
    $region52: #{tpu_custom_call.1} parent=1 // pred_region
      %1368 = dma.done [#allocation13], 128
    $region53: #{tpu_custom_call.1} parent=1 // pred_fallthru
      _
    %1369 = vsyncpa [#allocation11], 1
    %1370 = vsyncpa [#allocation13], 1

</llo_original>
